<compile_context>
chip_gen: v6e
topology: v6e:2x2x1
jax: 0.10.0
libtpu: 0.0.40
codegen_flags: <defaults>
</compile_context>

<pallas_src>
import functools

import jax
import jax.numpy as jnp
from jax import lax
from jax.experimental import pallas as pl
from jax.experimental.pallas import tpu as pltpu

EPS = 1e-4  # matches l2normalize(eps=0.0001)


# --------------------------------------------------------------------------- #
# Prologue: spectral norm (power_iterations = 1) for all four conv weights.
# Runs once, outside the batched grid, so the per-batch kernel never redoes it.
# --------------------------------------------------------------------------- #
def _sn_prologue_kernel(wt_ref, wp_ref, wg_ref, wo_ref,
                        ut_ref, up_ref, ug_ref, uo_ref,
                        wtn_ref, wpn_ref, wgn_ref, won_ref):
    for w_ref, u_ref, wn_ref in (
        (wt_ref, ut_ref, wtn_ref),
        (wp_ref, up_ref, wpn_ref),
        (wg_ref, ug_ref, wgn_ref),
        (wo_ref, uo_ref, won_ref),
    ):
        w = w_ref[...]                     # (Cout, Cin) f32
        u = u_ref[...]                     # (1, Cout)   f32
        # one power-iteration step:  v = l2n(W^T u); u = l2n(W v)
        v = jnp.dot(u, w, preferred_element_type=jnp.float32)             # (1, Cin)
        v = v / (jnp.sqrt(jnp.sum(v * v, keepdims=True)) + EPS)
        wv = lax.dot_general(v, w, (((1,), (1,)), ((), ())),
                             preferred_element_type=jnp.float32)          # (1, Cout) = (W v)^T
        u_new = wv / (jnp.sqrt(jnp.sum(wv * wv, keepdims=True)) + EPS)
        sigma = jnp.sum(u_new * wv, keepdims=True)                        # (1, 1)
        # normalized weight, emitted in bf16 for the MXU GEMMs (exact 1/sigma:
        # this runs once per call, so the approx reciprocal isn't worth the risk)
        wn_ref[...] = (w / sigma).astype(wn_ref.dtype)


# --------------------------------------------------------------------------- #
# Main kernel: one grid step handles `bt` batch elements.
# x layout: (C, bt*N) with lane index = b_t*N + (dy*2+dx)*N4 + (h2*W2 + w2),
# i.e. window-offset-major inside each batch element -> the 2x2 max-pool is a
# max over the four lane groups of the 1x1-conv output.
# --------------------------------------------------------------------------- #
def _self_attention_kernel(x_ref, wt_ref, wp_ref, wg_ref, wo_ref, gamma_ref,
                           y_ref, *, bt, n, n4, tq):
    x = x_ref[0]                           # (C, bt*n) f32
    x_bf = x.astype(jnp.bfloat16)
    wt = wt_ref[...]                       # (C//8, C)  bf16
    wp = wp_ref[...]                       # (C//8, C)  bf16
    wg = wg_ref[...]                       # (C//2, C)  bf16
    wo = wo_ref[...]                       # (C, C//2)  bf16
    gamma = gamma_ref[0, 0]                # scalar from SMEM

    # theta directly in query-major layout (bt*n, C//8): the logits GEMM's LHS
    # then needs no per-step transpose.
    theta_q = lax.dot_general(x_bf, wt, (((0,), (1,)), ((), ())),
                              preferred_element_type=jnp.float32
                              ).astype(jnp.bfloat16)                      # (bt*n, C//8)

    # phi / g: 1x1 conv over the full (lane-dense) spatial extent, f32 acc.
    phi_all = jnp.dot(wp, x_bf, preferred_element_type=jnp.float32)       # (C//8, bt*n)
    g_all = jnp.dot(wg, x_bf, preferred_element_type=jnp.float32)         # (C//2, bt*n)

    for b in range(bt):                    # short static per-batch loop
        base = b * n
        # fused 2x2 max-pool: max over the 4 window-offset lane groups (f32).
        phi = phi_all[:, base:base + n4]
        g = g_all[:, base:base + n4]
        for k in range(1, 4):
            off = base + k * n4
            phi = jnp.maximum(phi, phi_all[:, off:off + n4])
            g = jnp.maximum(g, g_all[:, off:off + n4])
        phi_bf = phi.astype(jnp.bfloat16)  # cast AFTER the f32 max
        g_bf = g.astype(jnp.bfloat16)

        # query-axis chunking keeps the (tq, n4) f32 softmax intermediates small
        # for realistic (large N) shapes.
        # TODO(synk): for very large N switch this static unroll to lax.fori_loop
        # so live ranges stay bounded, and optionally fp8-quantize `attn` for the
        # attn_g GEMM on v7x.
        for q0 in range(0, n, tq):
            qs = base + q0
            th = theta_q[qs:qs + tq, :]                                   # (tq, C//8) bf16
            # attention logits s[q, m] -> softmax over keys m (full key axis,
            # so no online-softmax rescaling is needed).
            s = jnp.dot(th, phi_bf, preferred_element_type=jnp.float32)   # (tq, n4) f32
            s_max = jnp.max(s, axis=-1, keepdims=True)
            e = jnp.exp(s - s_max)
            attn = e * pl.reciprocal(jnp.sum(e, axis=-1, keepdims=True),
                                     approx=True)
            attn_bf = attn.astype(jnp.bfloat16)
            # attn_g[c, q] = sum_m g[c, m] * attn[q, m]
            attn_g = lax.dot_general(g_bf, attn_bf, (((1,), (1,)), ((), ())),
                                     preferred_element_type=jnp.float32)  # (C//2, tq)
            # o_conv (1x1) + residual
            out = jnp.dot(wo, attn_g.astype(jnp.bfloat16),
                          preferred_element_type=jnp.float32)             # (C, tq)
            y_ref[0, :, qs:qs + tq] = gamma * out + x[:, qs:qs + tq]


# --------------------------------------------------------------------------- #
# Wrapper
# --------------------------------------------------------------------------- #
def _pick_bt(B):
    """Batch elements folded per grid step (keep grid >= 2 for megacore)."""
    if B <= 2:
        return 1
    for bt in (8, 4, 2):
        if B % bt == 0 and B // bt >= 2:
            return bt
    return 1


def _pick_tq(n):
    """Query-chunk size: multiple of 128 dividing N when possible."""
    for tq in (512, 256, 128):
        if n % tq == 0:
            return tq
    return n


def self_attention_forward(x, params):
    """x: (B, C, H, W) f32; params: dict of SpectralNorm conv params + gamma."""
    B, C, H, W = x.shape
    assert C % 8 == 0 and H % 2 == 0 and W % 2 == 0
    H2, W2 = H // 2, W // 2
    N = H * W
    N4 = N // 4
    Ct = C // 8          # theta / phi channels
    Cg = C // 2          # g channels

    # 2-D views of the 1x1 conv weights (== w.view(height, -1) in PyTorch)
    wt_bar = params["theta_w_bar"].reshape(Ct, C).astype(jnp.float32)
    wp_bar = params["phi_w_bar"].reshape(Ct, C).astype(jnp.float32)
    wg_bar = params["g_w_bar"].reshape(Cg, C).astype(jnp.float32)
    wo_bar = params["o_w_bar"].reshape(C, Cg).astype(jnp.float32)
    ut = params["theta_u"].reshape(1, Ct).astype(jnp.float32)
    up = params["phi_u"].reshape(1, Ct).astype(jnp.float32)
    ug = params["g_u"].reshape(1, Cg).astype(jnp.float32)
    uo = params["o_u"].reshape(1, C).astype(jnp.float32)

    # ---- spectral-norm prologue (once, not per batch tile) ----
    wt_n, wp_n, wg_n, wo_n = pl.pallas_call(
        _sn_prologue_kernel,
        out_shape=(
            jax.ShapeDtypeStruct((Ct, C), jnp.bfloat16),
            jax.ShapeDtypeStruct((Ct, C), jnp.bfloat16),
            jax.ShapeDtypeStruct((Cg, C), jnp.bfloat16),
            jax.ShapeDtypeStruct((C, Cg), jnp.bfloat16),
        ),
    )(wt_bar, wp_bar, wg_bar, wo_bar, ut, up, ug, uo)

    # ---- single activation layout (x is shipped to HBM exactly once) ----
    bt = _pick_bt(B)
    bg = B // bt
    tq = _pick_tq(N)

    # lane index inside a grid step = b_t*N + (dy*2+dx)*N4 + (h2*W2 + w2)
    x_perm = (
        x.reshape(bg, bt, C, H2, 2, W2, 2)        # (bg, bt, C, h2, dy, w2, dx)
        .transpose(0, 2, 1, 4, 6, 3, 5)           # (bg, C, bt, dy, dx, h2, w2)
        .reshape(bg, C, bt * N)
        .astype(jnp.float32)
    )
    gamma = params["gamma"].reshape(1, 1).astype(jnp.float32)

    kernel = functools.partial(_self_attention_kernel, bt=bt, n=N, n4=N4, tq=tq)

    flops = 2 * B * ((2 * Ct + Cg) * C * N      # theta + phi + g 1x1 convs
                     + N * N4 * Ct              # attention logits
                     + Cg * N4 * N              # attn @ g
                     + C * Cg * N)              # o_conv
    bytes_accessed = (x_perm.size * 4
                      + 2 * (wt_n.size + wp_n.size + wg_n.size + wo_n.size)
                      + B * C * N * 4)

    y_perm = pl.pallas_call(
        kernel,
        out_shape=jax.ShapeDtypeStruct((bg, C, bt * N), jnp.float32),
        grid=(bg,),
        in_specs=[
            pl.BlockSpec((1, C, bt * N), lambda b: (b, 0, 0)),
            pl.BlockSpec((Ct, C), lambda b: (0, 0)),
            pl.BlockSpec((Ct, C), lambda b: (0, 0)),
            pl.BlockSpec((Cg, C), lambda b: (0, 0)),
            pl.BlockSpec((C, Cg), lambda b: (0, 0)),
            pl.BlockSpec(memory_space=pltpu.MemorySpace.SMEM),   # gamma scalar
        ],
        out_specs=pl.BlockSpec((1, C, bt * N), lambda b: (b, 0, 0)),
        compiler_params=pltpu.CompilerParams(
            dimension_semantics=("parallel",),
            vmem_limit_bytes=32 * 1024 * 1024,
        ),
        cost_estimate=pl.CostEstimate(
            flops=flops, transcendentals=B * N * N4, bytes_accessed=bytes_accessed),
    )(x_perm, wt_n, wp_n, wg_n, wo_n, gamma)

    # un-permute lanes (bt, dy, dx, h2, w2) back to (B, C, H, W)
    y = (
        y_perm.reshape(bg, C, bt, 2, 2, H2, W2)   # (bg, C, bt, dy, dx, h2, w2)
        .transpose(0, 2, 1, 5, 3, 6, 4)           # (bg, bt, C, h2, dy, w2, dx)
        .reshape(B, C, H, W)
    )
    return y


# --------------------------------------------------------------------------- #
# Pure-JAX reference of SelfAttention.forward
# --------------------------------------------------------------------------- #
def _l2normalize(v):
    return v / (jnp.linalg.norm(v) + EPS)


def _sn_weight_ref(w_bar, u):
    cout = w_bar.shape[0]
    w2d = w_bar.reshape(cout, -1)
    v = _l2normalize(w2d.T @ u)
    u_new = _l2normalize(w2d @ v)
    sigma = u_new @ (w2d @ v)
    return w2d / sigma


def _pool2x2(t):
    B, C, H, W = t.shape
    return t.reshape(B, C, H // 2, 2, W // 2, 2).max(axis=(3, 5))


def _reference(x, params):
    B, C, H, W = x.shape
    N = H * W
    hp = lax.Precision.HIGHEST
    wt = _sn_weight_ref(params["theta_w_bar"], params["theta_u"])
    wp = _sn_weight_ref(params["phi_w_bar"], params["phi_u"])
    wg = _sn_weight_ref(params["g_w_bar"], params["g_u"])
    wo = _sn_weight_ref(params["o_w_bar"], params["o_u"])
    conv = lambda w, t: jnp.einsum("oc,bchw->bohw", w, t, precision=hp)

    theta = conv(wt, x).reshape(B, -1, N).transpose(0, 2, 1)          # (B, N, C/8)
    phi = _pool2x2(conv(wp, x)).reshape(B, -1, N // 4)                # (B, C/8, N/4)
    attn = jax.nn.softmax(
        jnp.einsum("bnc,bcm->bnm", theta, phi, precision=hp), axis=-1)  # (B, N, N/4)
    g = _pool2x2(conv(wg, x)).reshape(B, -1, N // 4)                  # (B, C/2, N/4)
    attn_g = jnp.einsum("bcm,bnm->bcn", g, attn, precision=hp).reshape(B, -1, H, W)
    out = conv(wo, attn_g)                                            # (B, C, H, W)
    return params["gamma"].reshape(1, 1, 1, 1) * out + x


if __name__ == "__main__":
    key = jax.random.PRNGKey(0)
    keys = jax.random.split(key, 10)

    B, C, H, W = 2, 32, 16, 16   # in_dim = 32 (must be divisible by 8)
    x = jax.random.normal(keys[0], (B, C, H, W), jnp.float32)

    def make_u(k, n):
        u = jax.random.normal(k, (n,), jnp.float32)
        return u / (jnp.linalg.norm(u) + EPS)

    params = {
        # SpectralNorm(Conv2d(C, C//8, 1, bias=False)) params: weight_bar + weight_u
        "theta_w_bar": jax.random.normal(keys[1], (C // 8, C, 1, 1), jnp.float32) * 0.1,
        "theta_u": make_u(keys[2], C // 8),
        "phi_w_bar": jax.random.normal(keys[3], (C // 8, C, 1, 1), jnp.float32) * 0.1,
        "phi_u": make_u(keys[4], C // 8),
        "g_w_bar": jax.random.normal(keys[5], (C // 2, C, 1, 1), jnp.float32) * 0.1,
        "g_u": make_u(keys[6], C // 2),
        "o_w_bar": jax.random.normal(keys[7], (C, C // 2, 1, 1), jnp.float32) * 0.1,
        "o_u": make_u(keys[8], C),
        # PyTorch initializes gamma to 0 (output would trivially equal x); use a
        # nonzero value so the attention path is actually exercised by the check.
        "gamma": jnp.array([0.7], jnp.float32),
    }

    fwd = jax.jit(self_attention_forward)
    out = jax.block_until_ready(fwd(x, params))

    ref = _reference(x, params)
    assert out.shape == (B, C, H, W)
    max_err = float(jnp.max(jnp.abs(out - ref)))
    assert jnp.allclose(out, ref, atol=1e-2, rtol=1e-2), max_err

    print("KERNEL_OK")
</pallas_src>

<mosaic_0001>
module attributes {stable_mosaic.version = 11 : i64} {
  func.func @_sn_prologue_kernel(%arg0: memref<4x32xf32, #tpu.memory_space<vmem>>, %arg1: memref<4x32xf32, #tpu.memory_space<vmem>>, %arg2: memref<16x32xf32, #tpu.memory_space<vmem>>, %arg3: memref<32x16xf32, #tpu.memory_space<vmem>>, %arg4: memref<1x4xf32, #tpu.memory_space<vmem>>, %arg5: memref<1x4xf32, #tpu.memory_space<vmem>>, %arg6: memref<1x16xf32, #tpu.memory_space<vmem>>, %arg7: memref<1x32xf32, #tpu.memory_space<vmem>>, %arg8: memref<4x32xbf16, #tpu.memory_space<vmem>>, %arg9: memref<4x32xbf16, #tpu.memory_space<vmem>>, %arg10: memref<16x32xbf16, #tpu.memory_space<vmem>>, %arg11: memref<32x16xbf16, #tpu.memory_space<vmem>>) attributes {dimension_semantics = [], scalar_prefetch = 0 : i64, scratch_operands = 0 : i64, tpu.core_type = #tpu.core_type<tc>} {
    %c0 = arith.constant 0 : index
    %c0_0 = arith.constant 0 : index
    %0 = vector.load %arg0[%c0, %c0_0] : memref<4x32xf32, #tpu.memory_space<vmem>>, vector<4x32xf32>
    %c0_1 = arith.constant 0 : index
    %c0_2 = arith.constant 0 : index
    %1 = vector.load %arg4[%c0_1, %c0_2] : memref<1x4xf32, #tpu.memory_space<vmem>>, vector<1x4xf32>
    %cst = arith.constant dense<0.000000e+00> : vector<1x32xf32>
    %2 = tpu.matmul %1, %0, %cst {dimension_numbers = #tpu.dot_dimension_numbers<[1], [0], [0], [1], [0, 0, 1, 1], [], []>} : vector<1x4xf32>, vector<4x32xf32>, vector<1x32xf32> -> vector<1x32xf32>
    %3 = arith.mulf %2, %2 : vector<1x32xf32>
    %4 = vector.shape_cast %3 : vector<1x32xf32> to vector<1x1x32xf32>
    %cst_3 = arith.constant dense<0.000000e+00> : vector<1xf32>
    %5 = vector.multi_reduction <add>, %4, %cst_3 [1, 2] : vector<1x1x32xf32> to vector<1xf32>
    %6 = vector.shape_cast %5 : vector<1xf32> to vector<1x1x1xf32>
    %7 = vector.extract %6[0, 0, 0] : f32 from vector<1x1x1xf32>
    %8 = vector.broadcast %7 : f32 to vector<1x1xf32>
    %9 = math.sqrt %8 : vector<1x1xf32>
    %cst_4 = arith.constant 9.99999974E-5 : f32
    %10 = vector.broadcast %cst_4 : f32 to vector<1x1xf32>
    %11 = arith.addf %9, %10 : vector<1x1xf32>
    %12 = vector.broadcast %11 : vector<1x1xf32> to vector<1x32xf32>
    %13 = arith.divf %2, %12 : vector<1x32xf32>
    %cst_5 = arith.constant dense<0.000000e+00> : vector<1x4xf32>
    %14 = tpu.matmul %13, %0, %cst_5 {dimension_numbers = #tpu.dot_dimension_numbers<[1], [1], [0], [0], [0, 0, 1, 0], [], []>} : vector<1x32xf32>, vector<4x32xf32>, vector<1x4xf32> -> vector<1x4xf32>
    %15 = arith.mulf %14, %14 : vector<1x4xf32>
    %16 = vector.shape_cast %15 : vector<1x4xf32> to vector<1x1x4xf32>
    %cst_6 = arith.constant dense<0.000000e+00> : vector<1xf32>
    %17 = vector.multi_reduction <add>, %16, %cst_6 [1, 2] : vector<1x1x4xf32> to vector<1xf32>
    %18 = vector.shape_cast %17 : vector<1xf32> to vector<1x1x1xf32>
    %19 = vector.extract %18[0, 0, 0] : f32 from vector<1x1x1xf32>
    %20 = vector.broadcast %19 : f32 to vector<1x1xf32>
    %21 = math.sqrt %20 : vector<1x1xf32>
    %cst_7 = arith.constant 9.99999974E-5 : f32
    %22 = vector.broadcast %cst_7 : f32 to vector<1x1xf32>
    %23 = arith.addf %21, %22 : vector<1x1xf32>
    %24 = vector.broadcast %23 : vector<1x1xf32> to vector<1x4xf32>
    %25 = arith.divf %14, %24 : vector<1x4xf32>
    %26 = arith.mulf %25, %14 : vector<1x4xf32>
    %27 = vector.shape_cast %26 : vector<1x4xf32> to vector<1x1x4xf32>
    %cst_8 = arith.constant dense<0.000000e+00> : vector<1xf32>
    %28 = vector.multi_reduction <add>, %27, %cst_8 [1, 2] : vector<1x1x4xf32> to vector<1xf32>
    %29 = vector.shape_cast %28 : vector<1xf32> to vector<1x1x1xf32>
    %30 = vector.extract %29[0, 0, 0] : f32 from vector<1x1x1xf32>
    %31 = vector.broadcast %30 : f32 to vector<1x1xf32>
    %32 = vector.broadcast %31 : vector<1x1xf32> to vector<4x32xf32>
    %33 = arith.divf %0, %32 : vector<4x32xf32>
    %34 = arith.truncf %33 : vector<4x32xf32> to vector<4x32xbf16>
    %c0_9 = arith.constant 0 : index
    %c0_10 = arith.constant 0 : index
    %35 = vector.load %arg8[%c0_9, %c0_10] : memref<4x32xbf16, #tpu.memory_space<vmem>>, vector<4x32xbf16>
    tpu.vector_store %arg8[%c0_9, %c0_10], %34 {strides = array<i32>} : memref<4x32xbf16, #tpu.memory_space<vmem>>, vector<4x32xbf16>,
    %c0_11 = arith.constant 0 : index
    %c0_12 = arith.constant 0 : index
    %36 = vector.load %arg1[%c0_11, %c0_12] : memref<4x32xf32, #tpu.memory_space<vmem>>, vector<4x32xf32>
    %c0_13 = arith.constant 0 : index
    %c0_14 = arith.constant 0 : index
    %37 = vector.load %arg5[%c0_13, %c0_14] : memref<1x4xf32, #tpu.memory_space<vmem>>, vector<1x4xf32>
    %cst_15 = arith.constant dense<0.000000e+00> : vector<1x32xf32>
    %38 = tpu.matmul %37, %36, %cst_15 {dimension_numbers = #tpu.dot_dimension_numbers<[1], [0], [0], [1], [0, 0, 1, 1], [], []>} : vector<1x4xf32>, vector<4x32xf32>, vector<1x32xf32> -> vector<1x32xf32>
    %39 = arith.mulf %38, %38 : vector<1x32xf32>
    %40 = vector.shape_cast %39 : vector<1x32xf32> to vector<1x1x32xf32>
    %cst_16 = arith.constant dense<0.000000e+00> : vector<1xf32>
    %41 = vector.multi_reduction <add>, %40, %cst_16 [1, 2] : vector<1x1x32xf32> to vector<1xf32>
    %42 = vector.shape_cast %41 : vector<1xf32> to vector<1x1x1xf32>
    %43 = vector.extract %42[0, 0, 0] : f32 from vector<1x1x1xf32>
    %44 = vector.broadcast %43 : f32 to vector<1x1xf32>
    %45 = math.sqrt %44 : vector<1x1xf32>
    %cst_17 = arith.constant 9.99999974E-5 : f32
    %46 = vector.broadcast %cst_17 : f32 to vector<1x1xf32>
    %47 = arith.addf %45, %46 : vector<1x1xf32>
    %48 = vector.broadcast %47 : vector<1x1xf32> to vector<1x32xf32>
    %49 = arith.divf %38, %48 : vector<1x32xf32>
    %cst_18 = arith.constant dense<0.000000e+00> : vector<1x4xf32>
    %50 = tpu.matmul %49, %36, %cst_18 {dimension_numbers = #tpu.dot_dimension_numbers<[1], [1], [0], [0], [0, 0, 1, 0], [], []>} : vector<1x32xf32>, vector<4x32xf32>, vector<1x4xf32> -> vector<1x4xf32>
    %51 = arith.mulf %50, %50 : vector<1x4xf32>
    %52 = vector.shape_cast %51 : vector<1x4xf32> to vector<1x1x4xf32>
    %cst_19 = arith.constant dense<0.000000e+00> : vector<1xf32>
    %53 = vector.multi_reduction <add>, %52, %cst_19 [1, 2] : vector<1x1x4xf32> to vector<1xf32>
    %54 = vector.shape_cast %53 : vector<1xf32> to vector<1x1x1xf32>
    %55 = vector.extract %54[0, 0, 0] : f32 from vector<1x1x1xf32>
    %56 = vector.broadcast %55 : f32 to vector<1x1xf32>
    %57 = math.sqrt %56 : vector<1x1xf32>
    %cst_20 = arith.constant 9.99999974E-5 : f32
    %58 = vector.broadcast %cst_20 : f32 to vector<1x1xf32>
    %59 = arith.addf %57, %58 : vector<1x1xf32>
    %60 = vector.broadcast %59 : vector<1x1xf32> to vector<1x4xf32>
    %61 = arith.divf %50, %60 : vector<1x4xf32>
    %62 = arith.mulf %61, %50 : vector<1x4xf32>
    %63 = vector.shape_cast %62 : vector<1x4xf32> to vector<1x1x4xf32>
    %cst_21 = arith.constant dense<0.000000e+00> : vector<1xf32>
    %64 = vector.multi_reduction <add>, %63, %cst_21 [1, 2] : vector<1x1x4xf32> to vector<1xf32>
    %65 = vector.shape_cast %64 : vector<1xf32> to vector<1x1x1xf32>
    %66 = vector.extract %65[0, 0, 0] : f32 from vector<1x1x1xf32>
    %67 = vector.broadcast %66 : f32 to vector<1x1xf32>
    %68 = vector.broadcast %67 : vector<1x1xf32> to vector<4x32xf32>
    %69 = arith.divf %36, %68 : vector<4x32xf32>
    %70 = arith.truncf %69 : vector<4x32xf32> to vector<4x32xbf16>
    %c0_22 = arith.constant 0 : index
    %c0_23 = arith.constant 0 : index
    %71 = vector.load %arg9[%c0_22, %c0_23] : memref<4x32xbf16, #tpu.memory_space<vmem>>, vector<4x32xbf16>
    tpu.vector_store %arg9[%c0_22, %c0_23], %70 {strides = array<i32>} : memref<4x32xbf16, #tpu.memory_space<vmem>>, vector<4x32xbf16>,
    %c0_24 = arith.constant 0 : index
    %c0_25 = arith.constant 0 : index
    %72 = vector.load %arg2[%c0_24, %c0_25] : memref<16x32xf32, #tpu.memory_space<vmem>>, vector<16x32xf32>
    %c0_26 = arith.constant 0 : index
    %c0_27 = arith.constant 0 : index
    %73 = vector.load %arg6[%c0_26, %c0_27] : memref<1x16xf32, #tpu.memory_space<vmem>>, vector<1x16xf32>
    %cst_28 = arith.constant dense<0.000000e+00> : vector<1x32xf32>
    %74 = tpu.matmul %73, %72, %cst_28 {dimension_numbers = #tpu.dot_dimension_numbers<[1], [0], [0], [1], [0, 0, 1, 1], [], []>} : vector<1x16xf32>, vector<16x32xf32>, vector<1x32xf32> -> vector<1x32xf32>
    %75 = arith.mulf %74, %74 : vector<1x32xf32>
    %76 = vector.shape_cast %75 : vector<1x32xf32> to vector<1x1x32xf32>
    %cst_29 = arith.constant dense<0.000000e+00> : vector<1xf32>
    %77 = vector.multi_reduction <add>, %76, %cst_29 [1, 2] : vector<1x1x32xf32> to vector<1xf32>
    %78 = vector.shape_cast %77 : vector<1xf32> to vector<1x1x1xf32>
    %79 = vector.extract %78[0, 0, 0] : f32 from vector<1x1x1xf32>
    %80 = vector.broadcast %79 : f32 to vector<1x1xf32>
    %81 = math.sqrt %80 : vector<1x1xf32>
    %cst_30 = arith.constant 9.99999974E-5 : f32
    %82 = vector.broadcast %cst_30 : f32 to vector<1x1xf32>
    %83 = arith.addf %81, %82 : vector<1x1xf32>
    %84 = vector.broadcast %83 : vector<1x1xf32> to vector<1x32xf32>
    %85 = arith.divf %74, %84 : vector<1x32xf32>
    %cst_31 = arith.constant dense<0.000000e+00> : vector<1x16xf32>
    %86 = tpu.matmul %85, %72, %cst_31 {dimension_numbers = #tpu.dot_dimension_numbers<[1], [1], [0], [0], [0, 0, 1, 0], [], []>} : vector<1x32xf32>, vector<16x32xf32>, vector<1x16xf32> -> vector<1x16xf32>
    %87 = arith.mulf %86, %86 : vector<1x16xf32>
    %88 = vector.shape_cast %87 : vector<1x16xf32> to vector<1x1x16xf32>
    %cst_32 = arith.constant dense<0.000000e+00> : vector<1xf32>
    %89 = vector.multi_reduction <add>, %88, %cst_32 [1, 2] : vector<1x1x16xf32> to vector<1xf32>
    %90 = vector.shape_cast %89 : vector<1xf32> to vector<1x1x1xf32>
    %91 = vector.extract %90[0, 0, 0] : f32 from vector<1x1x1xf32>
    %92 = vector.broadcast %91 : f32 to vector<1x1xf32>
    %93 = math.sqrt %92 : vector<1x1xf32>
    %cst_33 = arith.constant 9.99999974E-5 : f32
    %94 = vector.broadcast %cst_33 : f32 to vector<1x1xf32>
    %95 = arith.addf %93, %94 : vector<1x1xf32>
    %96 = vector.broadcast %95 : vector<1x1xf32> to vector<1x16xf32>
    %97 = arith.divf %86, %96 : vector<1x16xf32>
    %98 = arith.mulf %97, %86 : vector<1x16xf32>
    %99 = vector.shape_cast %98 : vector<1x16xf32> to vector<1x1x16xf32>
    %cst_34 = arith.constant dense<0.000000e+00> : vector<1xf32>
    %100 = vector.multi_reduction <add>, %99, %cst_34 [1, 2] : vector<1x1x16xf32> to vector<1xf32>
    %101 = vector.shape_cast %100 : vector<1xf32> to vector<1x1x1xf32>
    %102 = vector.extract %101[0, 0, 0] : f32 from vector<1x1x1xf32>
    %103 = vector.broadcast %102 : f32 to vector<1x1xf32>
    %104 = vector.broadcast %103 : vector<1x1xf32> to vector<16x32xf32>
    %105 = arith.divf %72, %104 : vector<16x32xf32>
    %106 = arith.truncf %105 : vector<16x32xf32> to vector<16x32xbf16>
    %c0_35 = arith.constant 0 : index
    %c0_36 = arith.constant 0 : index
    %107 = vector.load %arg10[%c0_35, %c0_36] : memref<16x32xbf16, #tpu.memory_space<vmem>>, vector<16x32xbf16>
    tpu.vector_store %arg10[%c0_35, %c0_36], %106 {strides = array<i32>} : memref<16x32xbf16, #tpu.memory_space<vmem>>, vector<16x32xbf16>,
    %c0_37 = arith.constant 0 : index
    %c0_38 = arith.constant 0 : index
    %108 = vector.load %arg3[%c0_37, %c0_38] : memref<32x16xf32, #tpu.memory_space<vmem>>, vector<32x16xf32>
    %c0_39 = arith.constant 0 : index
    %c0_40 = arith.constant 0 : index
    %109 = vector.load %arg7[%c0_39, %c0_40] : memref<1x32xf32, #tpu.memory_space<vmem>>, vector<1x32xf32>
    %cst_41 = arith.constant dense<0.000000e+00> : vector<1x16xf32>
    %110 = tpu.matmul %109, %108, %cst_41 {dimension_numbers = #tpu.dot_dimension_numbers<[1], [0], [0], [1], [0, 0, 1, 1], [], []>} : vector<1x32xf32>, vector<32x16xf32>, vector<1x16xf32> -> vector<1x16xf32>
    %111 = arith.mulf %110, %110 : vector<1x16xf32>
    %112 = vector.shape_cast %111 : vector<1x16xf32> to vector<1x1x16xf32>
    %cst_42 = arith.constant dense<0.000000e+00> : vector<1xf32>
    %113 = vector.multi_reduction <add>, %112, %cst_42 [1, 2] : vector<1x1x16xf32> to vector<1xf32>
    %114 = vector.shape_cast %113 : vector<1xf32> to vector<1x1x1xf32>
    %115 = vector.extract %114[0, 0, 0] : f32 from vector<1x1x1xf32>
    %116 = vector.broadcast %115 : f32 to vector<1x1xf32>
    %117 = math.sqrt %116 : vector<1x1xf32>
    %cst_43 = arith.constant 9.99999974E-5 : f32
    %118 = vector.broadcast %cst_43 : f32 to vector<1x1xf32>
    %119 = arith.addf %117, %118 : vector<1x1xf32>
    %120 = vector.broadcast %119 : vector<1x1xf32> to vector<1x16xf32>
    %121 = arith.divf %110, %120 : vector<1x16xf32>
    %cst_44 = arith.constant dense<0.000000e+00> : vector<1x32xf32>
    %122 = tpu.matmul %121, %108, %cst_44 {dimension_numbers = #tpu.dot_dimension_numbers<[1], [1], [0], [0], [0, 0, 1, 0], [], []>} : vector<1x16xf32>, vector<32x16xf32>, vector<1x32xf32> -> vector<1x32xf32>
    %123 = arith.mulf %122, %122 : vector<1x32xf32>
    %124 = vector.shape_cast %123 : vector<1x32xf32> to vector<1x1x32xf32>
    %cst_45 = arith.constant dense<0.000000e+00> : vector<1xf32>
    %125 = vector.multi_reduction <add>, %124, %cst_45 [1, 2] : vector<1x1x32xf32> to vector<1xf32>
    %126 = vector.shape_cast %125 : vector<1xf32> to vector<1x1x1xf32>
    %127 = vector.extract %126[0, 0, 0] : f32 from vector<1x1x1xf32>
    %128 = vector.broadcast %127 : f32 to vector<1x1xf32>
    %129 = math.sqrt %128 : vector<1x1xf32>
    %cst_46 = arith.constant 9.99999974E-5 : f32
    %130 = vector.broadcast %cst_46 : f32 to vector<1x1xf32>
    %131 = arith.addf %129, %130 : vector<1x1xf32>
    %132 = vector.broadcast %131 : vector<1x1xf32> to vector<1x32xf32>
    %133 = arith.divf %122, %132 : vector<1x32xf32>
    %134 = arith.mulf %133, %122 : vector<1x32xf32>
    %135 = vector.shape_cast %134 : vector<1x32xf32> to vector<1x1x32xf32>
    %cst_47 = arith.constant dense<0.000000e+00> : vector<1xf32>
    %136 = vector.multi_reduction <add>, %135, %cst_47 [1, 2] : vector<1x1x32xf32> to vector<1xf32>
    %137 = vector.shape_cast %136 : vector<1xf32> to vector<1x1x1xf32>
    %138 = vector.extract %137[0, 0, 0] : f32 from vector<1x1x1xf32>
    %139 = vector.broadcast %138 : f32 to vector<1x1xf32>
    %140 = vector.broadcast %139 : vector<1x1xf32> to vector<32x16xf32>
    %141 = arith.divf %108, %140 : vector<32x16xf32>
    %142 = arith.truncf %141 : vector<32x16xf32> to vector<32x16xbf16>
    %c0_48 = arith.constant 0 : index
    %c0_49 = arith.constant 0 : index
    %143 = vector.load %arg11[%c0_48, %c0_49] : memref<32x16xbf16, #tpu.memory_space<vmem>>, vector<32x16xbf16>
    tpu.vector_store %arg11[%c0_48, %c0_49], %142 {strides = array<i32>} : memref<32x16xbf16, #tpu.memory_space<vmem>>, vector<32x16xbf16>,
    return
  }
}

module attributes {stable_mosaic.version = 11 : i64} {
  func.func @_self_attention_kernel(%arg0: i32, %arg1: memref<1x32x256xf32, #tpu.memory_space<vmem>>, %arg2: memref<4x32xbf16, #tpu.memory_space<vmem>>, %arg3: memref<4x32xbf16, #tpu.memory_space<vmem>>, %arg4: memref<16x32xbf16, #tpu.memory_space<vmem>>, %arg5: memref<32x16xbf16, #tpu.memory_space<vmem>>, %arg6: memref<1x1xf32, #tpu.memory_space<smem>>, %arg7: memref<1x32x256xf32, #tpu.memory_space<vmem>>) attributes {dimension_semantics = [#tpu.dimension_semantics<parallel>], iteration_bounds = array<i64: 2>, scalar_prefetch = 0 : i64, scratch_operands = 0 : i64, tpu.core_type = #tpu.core_type<tc>, window_params = [{transform_indices = @transform_0, window_bounds = array<i64: 1, 32, 256>}, {pipeline_mode = #tpu.pipeline_mode<synchronous>, transform_indices = @transform_1, window_bounds = array<i64: 4, 32>}, {pipeline_mode = #tpu.pipeline_mode<synchronous>, transform_indices = @transform_2, window_bounds = array<i64: 4, 32>}, {pipeline_mode = #tpu.pipeline_mode<synchronous>, transform_indices = @transform_3, window_bounds = array<i64: 16, 32>}, {pipeline_mode = #tpu.pipeline_mode<synchronous>, transform_indices = @transform_4, window_bounds = array<i64: 32, 16>}, {transform_indices = @transform_5, window_bounds = array<i64: 1, 1>}, {transform_indices = @transform_6, window_bounds = array<i64: 1, 32, 256>}]} {
    %c0 = arith.constant 0 : index
    %c0_0 = arith.constant 0 : index
    %c0_1 = arith.constant 0 : index
    %0 = vector.load %arg1[%c0, %c0_0, %c0_1] : memref<1x32x256xf32, #tpu.memory_space<vmem>>, vector<1x32x256xf32>
    %1 = vector.shape_cast %0 : vector<1x32x256xf32> to vector<32x256xf32>
    %2 = arith.truncf %1 : vector<32x256xf32> to vector<32x256xbf16>
    %c0_2 = arith.constant 0 : index
    %c0_3 = arith.constant 0 : index
    %3 = vector.load %arg2[%c0_2, %c0_3] : memref<4x32xbf16, #tpu.memory_space<vmem>>, vector<4x32xbf16>
    %c0_4 = arith.constant 0 : index
    %c0_5 = arith.constant 0 : index
    %4 = vector.load %arg3[%c0_4, %c0_5] : memref<4x32xbf16, #tpu.memory_space<vmem>>, vector<4x32xbf16>
    %c0_6 = arith.constant 0 : index
    %c0_7 = arith.constant 0 : index
    %5 = vector.load %arg4[%c0_6, %c0_7] : memref<16x32xbf16, #tpu.memory_space<vmem>>, vector<16x32xbf16>
    %c0_8 = arith.constant 0 : index
    %c0_9 = arith.constant 0 : index
    %6 = vector.load %arg5[%c0_8, %c0_9] : memref<32x16xbf16, #tpu.memory_space<vmem>>, vector<32x16xbf16>
    %c0_10 = arith.constant 0 : index
    %c0_11 = arith.constant 0 : index
    %7 = memref.load %arg6[%c0_10, %c0_11] : memref<1x1xf32, #tpu.memory_space<smem>>
    %cst = arith.constant dense<0.000000e+00> : vector<256x4xf32>
    %8 = tpu.matmul %2, %3, %cst {dimension_numbers = #tpu.dot_dimension_numbers<[0], [1], [1], [0], [0, 1, 1, 0], [], []>} : vector<32x256xbf16>, vector<4x32xbf16>, vector<256x4xf32> -> vector<256x4xf32>
    %9 = arith.truncf %8 : vector<256x4xf32> to vector<256x4xbf16>
    %cst_12 = arith.constant dense<0.000000e+00> : vector<4x256xf32>
    %10 = tpu.matmul %4, %2, %cst_12 {dimension_numbers = #tpu.dot_dimension_numbers<[1], [0], [0], [1], [0, 0, 1, 1], [], []>} : vector<4x32xbf16>, vector<32x256xbf16>, vector<4x256xf32> -> vector<4x256xf32>
    %cst_13 = arith.constant dense<0.000000e+00> : vector<16x256xf32>
    %11 = tpu.matmul %5, %2, %cst_13 {dimension_numbers = #tpu.dot_dimension_numbers<[1], [0], [0], [1], [0, 0, 1, 1], [], []>} : vector<16x32xbf16>, vector<32x256xbf16>, vector<16x256xf32> -> vector<16x256xf32>
    %12 = vector.extract_strided_slice %10 {offsets = [0, 0], sizes = [4, 64], strides = [1, 1]} : vector<4x256xf32> to vector<4x64xf32>
    %13 = vector.extract_strided_slice %11 {offsets = [0, 0], sizes = [16, 64], strides = [1, 1]} : vector<16x256xf32> to vector<16x64xf32>
    %14 = vector.extract_strided_slice %10 {offsets = [0, 64], sizes = [4, 64], strides = [1, 1]} : vector<4x256xf32> to vector<4x64xf32>
    %15 = arith.maximumf %12, %14 : vector<4x64xf32>
    %16 = vector.extract_strided_slice %11 {offsets = [0, 64], sizes = [16, 64], strides = [1, 1]} : vector<16x256xf32> to vector<16x64xf32>
    %17 = arith.maximumf %13, %16 : vector<16x64xf32>
    %18 = vector.extract_strided_slice %10 {offsets = [0, 128], sizes = [4, 64], strides = [1, 1]} : vector<4x256xf32> to vector<4x64xf32>
    %19 = arith.maximumf %15, %18 : vector<4x64xf32>
    %20 = vector.extract_strided_slice %11 {offsets = [0, 128], sizes = [16, 64], strides = [1, 1]} : vector<16x256xf32> to vector<16x64xf32>
    %21 = arith.maximumf %17, %20 : vector<16x64xf32>
    %22 = vector.extract_strided_slice %10 {offsets = [0, 192], sizes = [4, 64], strides = [1, 1]} : vector<4x256xf32> to vector<4x64xf32>
    %23 = arith.maximumf %19, %22 : vector<4x64xf32>
    %24 = vector.extract_strided_slice %11 {offsets = [0, 192], sizes = [16, 64], strides = [1, 1]} : vector<16x256xf32> to vector<16x64xf32>
    %25 = arith.maximumf %21, %24 : vector<16x64xf32>
    %26 = arith.truncf %23 : vector<4x64xf32> to vector<4x64xbf16>
    %27 = arith.truncf %25 : vector<16x64xf32> to vector<16x64xbf16>
    %cst_14 = arith.constant dense<0.000000e+00> : vector<256x64xf32>
    %28 = tpu.matmul %9, %26, %cst_14 {dimension_numbers = #tpu.dot_dimension_numbers<[1], [0], [0], [1], [0, 0, 1, 1], [], []>} : vector<256x4xbf16>, vector<4x64xbf16>, vector<256x64xf32> -> vector<256x64xf32>
    %cst_15 = arith.constant dense<0xFF800000> : vector<256xf32>
    %29 = vector.multi_reduction <maximumf>, %28, %cst_15 [1] : vector<256x64xf32> to vector<256xf32>
    %30 = vector.shape_cast %29 : vector<256xf32> to vector<256x1xf32>
    %31 = vector.broadcast %30 : vector<256x1xf32> to vector<256x64xf32>
    %32 = arith.subf %28, %31 : vector<256x64xf32>
    %33 = math.exp %32 : vector<256x64xf32>
    %cst_16 = arith.constant dense<0.000000e+00> : vector<256xf32>
    %34 = vector.multi_reduction <add>, %33, %cst_16 [1] : vector<256x64xf32> to vector<256xf32>
    %35 = vector.shape_cast %34 : vector<256xf32> to vector<256x1xf32>
    %36 = tpu.reciprocal %35 {approx = true} : vector<256x1xf32> -> vector<256x1xf32>
    %37 = vector.broadcast %36 : vector<256x1xf32> to vector<256x64xf32>
    %38 = arith.mulf %33, %37 : vector<256x64xf32>
    %39 = arith.truncf %38 : vector<256x64xf32> to vector<256x64xbf16>
    %cst_17 = arith.constant dense<0.000000e+00> : vector<16x256xf32>
    %40 = tpu.matmul %27, %39, %cst_17 {dimension_numbers = #tpu.dot_dimension_numbers<[1], [1], [0], [0], [0, 0, 1, 0], [], []>} : vector<16x64xbf16>, vector<256x64xbf16>, vector<16x256xf32> -> vector<16x256xf32>
    %41 = arith.truncf %40 : vector<16x256xf32> to vector<16x256xbf16>
    %cst_18 = arith.constant dense<0.000000e+00> : vector<32x256xf32>
    %42 = tpu.matmul %6, %41, %cst_18 {dimension_numbers = #tpu.dot_dimension_numbers<[1], [0], [0], [1], [0, 0, 1, 1], [], []>} : vector<32x16xbf16>, vector<16x256xbf16>, vector<32x256xf32> -> vector<32x256xf32>
    %43 = vector.broadcast %7 : f32 to vector<32x256xf32>
    %44 = arith.mulf %43, %42 : vector<32x256xf32>
    %45 = arith.addf %44, %1 : vector<32x256xf32>
    %c0_19 = arith.constant 0 : index
    %c0_20 = arith.constant 0 : index
    %c0_21 = arith.constant 0 : index
    %46 = vector.load %arg7[%c0_19, %c0_20, %c0_21] : memref<1x32x256xf32, #tpu.memory_space<vmem>>, vector<1x32x256xf32>
    %47 = vector.shape_cast %46 : vector<1x32x256xf32> to vector<32x256xf32>
    %48 = vector.shape_cast %45 : vector<32x256xf32> to vector<1x32x256xf32>
    tpu.vector_store %arg7[%c0_19, %c0_20, %c0_21], %48 {strides = array<i32>} : memref<1x32x256xf32, #tpu.memory_space<vmem>>, vector<1x32x256xf32>,
    return
  }
  func.func @transform_0(%arg0: i32) -> (i32, i32, i32) {
    %c0_i32 = arith.constant 0 : i32
    %c0_i32_0 = arith.constant 0 : i32
    %c0_i32_1 = arith.constant 0 : i32
    return %arg0, %c0_i32, %c0_i32_0 : i32, i32, i32
  }
  func.func @transform_1(%arg0: i32) -> (i32, i32) {
    %c0_i32 = arith.constant 0 : i32
    %c0_i32_0 = arith.constant 0 : i32
    %c0_i32_1 = arith.constant 0 : i32
    return %c0_i32, %c0_i32_0 : i32, i32
  }
  func.func @transform_2(%arg0: i32) -> (i32, i32) {
    %c0_i32 = arith.constant 0 : i32
    %c0_i32_0 = arith.constant 0 : i32
    %c0_i32_1 = arith.constant 0 : i32
    return %c0_i32, %c0_i32_0 : i32, i32
  }
  func.func @transform_3(%arg0: i32) -> (i32, i32) {
    %c0_i32 = arith.constant 0 : i32
    %c0_i32_0 = arith.constant 0 : i32
    %c0_i32_1 = arith.constant 0 : i32
    return %c0_i32, %c0_i32_0 : i32, i32
  }
  func.func @transform_4(%arg0: i32) -> (i32, i32) {
    %c0_i32 = arith.constant 0 : i32
    %c0_i32_0 = arith.constant 0 : i32
    %c0_i32_1 = arith.constant 0 : i32
    return %c0_i32, %c0_i32_0 : i32, i32
  }
  func.func @transform_5(%arg0: i32) -> (i32, i32) {
    %c0_i32 = arith.constant 0 : i32
    %c0_i32_0 = arith.constant 0 : i32
    %c0_i32_1 = arith.constant 0 : i32
    return %c0_i32, %c0_i32_0 : i32, i32
  }
  func.func @transform_6(%arg0: i32) -> (i32, i32, i32) {
    %c0_i32 = arith.constant 0 : i32
    %c0_i32_0 = arith.constant 0 : i32
    %c0_i32_1 = arith.constant 0 : i32
    return %arg0, %c0_i32, %c0_i32_0 : i32, i32, i32
  }
}

</mosaic_0001>

<llo_original>
// kernel: self_attention_forward.2
$region0: #{self_attention_forward.2}
  #allocation0 [shape = 'u32[]', space=smem, size = 0x4, offset = 0x4, fixed_abs, tag = 'smem constant byte address 0x4 - core index']
  #allocation1 [shape = 'u32[144,128]{1,0:T(1,128)}', space=vmem, size = 0x12000, scoped, tag = 'internal scratch']
  %s0 = inlined_call_operand.vmem [shape: f32[4,32], index: 0, kind: input, shape index: {}]
  %s1 = inlined_call_operand.vmem [shape: f32[4,32], index: 1, kind: input, shape index: {}]
  %s2 = inlined_call_operand.vmem [shape: f32[16,32], index: 2, kind: input, shape index: {}]
  %s3 = inlined_call_operand.vmem [shape: f32[32,16], index: 3, kind: input, shape index: {}]
  %s4 = inlined_call_operand.vmem [shape: f32[1,4], index: 4, kind: input, shape index: {}]
  %s5 = inlined_call_operand.vmem [shape: f32[1,4], index: 5, kind: input, shape index: {}]
  %s6 = inlined_call_operand.vmem [shape: f32[1,16], index: 6, kind: input, shape index: {}]
  %s7 = inlined_call_operand.vmem [shape: f32[1,32], index: 7, kind: input, shape index: {}]
  %s8 = inlined_call_operand.vmem [shape: bf16[4,32], index: 8, kind: output, shape index: {0}]
  %s9 = inlined_call_operand.vmem [shape: bf16[4,32], index: 9, kind: output, shape index: {1}]
  %s10 = inlined_call_operand.vmem [shape: bf16[16,32], index: 10, kind: output, shape index: {2}]
  %s11 = inlined_call_operand.vmem [shape: bf16[32,16], index: 11, kind: output, shape index: {3}]
  %12 = xla_tuple %s8, %s9, %s10, %s11
  %s13 = sld [smem:[#allocation0]]
  $region66: #{self_attention_forward.2} parent=0
    _
  %s15 = ssub.s32 1, %s13
  %s16 = scalar_select 0, %s15, %s13
  // Predicated region
  $region2: #{self_attention_forward.2} parent=0 // pred_check
    _
  $region3: #{self_attention_forward.2} parent=0 // pred_check_branch
    %18 = sbr.rel (0) target = $region5
  $region4: #{self_attention_forward.2} parent=0 // pred_region
    _
  $region5: #{self_attention_forward.2} parent=0 // pred_fallthru
    _
  // Predicated region
  $region6: #{self_attention_forward.2} parent=0 // pred_check
    _
  $region7: #{self_attention_forward.2} parent=0 // pred_check_branch
    %20 = sbr.rel (0) target = $region9
  $region8: #{self_attention_forward.2} parent=0 // pred_region
    _
  $region9: #{self_attention_forward.2} parent=0 // pred_fallthru
    _
  // Predicated region
  $region10: #{self_attention_forward.2} parent=0 // pred_check
    _
  $region11: #{self_attention_forward.2} parent=0 // pred_check_branch
    %22 = sbr.rel (0) target = $region13
  $region12: #{self_attention_forward.2} parent=0 // pred_region
    _
  $region13: #{self_attention_forward.2} parent=0 // pred_fallthru
    _
  // Predicated region
  $region14: #{self_attention_forward.2} parent=0 // pred_check
    _
  $region15: #{self_attention_forward.2} parent=0 // pred_check_branch
    %24 = sbr.rel (0) target = $region17
  $region16: #{self_attention_forward.2} parent=0 // pred_region
    _
  $region17: #{self_attention_forward.2} parent=0 // pred_fallthru
    _
  // Predicated region
  $region18: #{self_attention_forward.2} parent=0 // pred_check
    _
  $region19: #{self_attention_forward.2} parent=0 // pred_check_branch
    %26 = sbr.rel (0) target = $region21
  $region20: #{self_attention_forward.2} parent=0 // pred_region
    _
  $region21: #{self_attention_forward.2} parent=0 // pred_fallthru
    _
  // Predicated region
  $region22: #{self_attention_forward.2} parent=0 // pred_check
    _
  $region23: #{self_attention_forward.2} parent=0 // pred_check_branch
    %28 = sbr.rel (0) target = $region25
  $region24: #{self_attention_forward.2} parent=0 // pred_region
    _
  $region25: #{self_attention_forward.2} parent=0 // pred_fallthru
    _
  // Predicated region
  $region26: #{self_attention_forward.2} parent=0 // pred_check
    _
  $region27: #{self_attention_forward.2} parent=0 // pred_check_branch
    %30 = sbr.rel (0) target = $region29
  $region28: #{self_attention_forward.2} parent=0 // pred_region
    _
  $region29: #{self_attention_forward.2} parent=0 // pred_fallthru
    _
  // Predicated region
  $region30: #{self_attention_forward.2} parent=0 // pred_check
    _
  $region31: #{self_attention_forward.2} parent=0 // pred_check_branch
    %32 = sbr.rel (0) target = $region33
  $region32: #{self_attention_forward.2} parent=0 // pred_region
    _
  $region33: #{self_attention_forward.2} parent=0 // pred_fallthru
    _
  %v33 = vld [vmem:[%s0] sm:$0xf]
  %v34 = vld [vmem:[%s4] sm:$0x1]
  %vm35 = vcmask 31744
  %v37 = vsel %vm35, %v34, 0
  %vm39 = vcmask 1043456
  %v41 = vsel %vm39, %v33, 0
  %43 = vmatprep.subr.mxu0 0.0
  %44 = vmatpush1.msra.mxu0 0.0
  %45 = vmatprep.subr.mxu0 0.0
  %46 = vmatpush1.msra.mxu0 0.0
  %47 = vmatprep.subr.mxu0 0.0
  %48 = vmatpush1.msra.mxu0 0.0
  %49 = vmatprep.subr.mxu0 0.0
  %50 = vmatpush1.msra.mxu0 0.0
  %51 = vmatprep.subr.mxu0 0.0
  %52 = vmatpush1.msra.mxu0 0.0
  %53 = vmatprep.subr.mxu0 0.0
  %54 = vmatpush1.msra.mxu0 0.0
  %55 = vmatprep.subr.mxu0 0.0
  %56 = vmatpush1.msra.mxu0 0.0
  %57 = vmatprep.subr.mxu0 0.0
  %58 = vmatpush1.msra.mxu0 0.0
  %59 = vmatprep.subr.mxu0 0.0
  %60 = vmatpush1.msra.mxu0 0.0
  %61 = vmatprep.subr.mxu0 0.0
  %62 = vmatpush1.msra.mxu0 0.0
  %63 = vmatprep.subr.mxu0 0.0
  %64 = vmatpush1.msra.mxu0 0.0
  %65 = vmatprep.subr.mxu0 0.0
  %66 = vmatpush1.msra.mxu0 0.0
  %67 = vmatprep.subr.mxu0 0.0
  %68 = vmatpush1.msra.mxu0 0.0
  %69 = vmatprep.subr.mxu0 0.0
  %70 = vmatpush1.msra.mxu0 0.0
  %71 = vmatprep.subr.mxu0 0.0
  %72 = vmatpush1.msra.mxu0 0.0
  %73 = vmatprep.subr.mxu0 0.0
  %74 = vmatpush1.msra.mxu0 %v41
  %75 = vmatprep.subr.mxu0 0.0
  %76 = vmatpush2.msra.mxu0 0.0
  %77 = vmatprep.subr.mxu0 0.0
  %78 = vmatpush2.msra.mxu0 0.0
  %79 = vmatprep.subr.mxu0 0.0
  %80 = vmatpush2.msra.mxu0 0.0
  %81 = vmatprep.subr.mxu0 0.0
  %82 = vmatpush2.msra.mxu0 0.0
  %83 = vmatprep.subr.mxu0 0.0
  %84 = vmatpush2.msra.mxu0 0.0
  %85 = vmatprep.subr.mxu0 0.0
  %86 = vmatpush2.msra.mxu0 0.0
  %87 = vmatprep.subr.mxu0 0.0
  %88 = vmatpush2.msra.mxu0 0.0
  %89 = vmatprep.subr.mxu0 0.0
  %90 = vmatpush2.msra.mxu0 0.0
  %91 = vmatprep.subr.mxu0 0.0
  %92 = vmatpush2.msra.mxu0 0.0
  %93 = vmatprep.subr.mxu0 0.0
  %94 = vmatpush2.msra.mxu0 0.0
  %95 = vmatprep.subr.mxu0 0.0
  %96 = vmatpush2.msra.mxu0 0.0
  %97 = vmatprep.subr.mxu0 0.0
  %98 = vmatpush2.msra.mxu0 0.0
  %99 = vmatprep.subr.mxu0 0.0
  %100 = vmatpush2.msra.mxu0 0.0
  %101 = vmatprep.subr.mxu0 0.0
  %102 = vmatpush2.msra.mxu0 0.0
  %103 = vmatprep.subr.mxu0 0.0
  %104 = vmatpush2.msra.mxu0 0.0
  %105 = vmatprep.subr.mxu0 0.0
  %106 = vmatpush2.msra.mxu0 0.0
  %107 = vmatprep.mubr.f32.mxu0 0.0
  %108 = vmatmul.mubr.f32.gmra.mxu0 %v37
  %v109 = vpop.f32.mrf.mxu0
  %v110 = vadd.f32 0.0, %v109
  %v111 = vpop.f32.mrf.mxu0
  %112 = vdwg.mxu0
  %v113 = vmul.f32 %v110, %v110
  %vm114 = vcmask 253952
  %v115 = vsel %vm114, %v113, 0.0
  %116 = vadd.xlane.f32.xlu0 %v115
  %v117 = vpop.xlane.xlu0 %116
  %v118 = vrot.slane %v117, 4
  %v119 = vadd.f32 %v117, %v118
  %v120 = vrot.slane %v119, 2
  %v121 = vadd.f32 %v119, %v120
  %v122 = vrot.slane %v121, 1
  %v123 = vadd.f32 %v121, %v122
  %s124 = vtos %v123
  %v125 = vstv %s124
  %v126 = vrsqrt.pop %v125
  %v127 = vmul.f32 %v125, %v126
  %vm128 = vcmp.eq.f32.partialorder %v125, inf
  %v129 = vsel %vm128, %v125, %v127
  %vm130 = vcmp.eq.f32.partialorder %v125, 0.0
  %v131 = vand.u32 %v125, 2147483648
  %v132 = vsel %vm130, %v131, %v129
  %v133 = vadd.f32 %v132, 0.0001
  %v134 = vrcp.pop %v133
  %v135 = vmul.f32 %v110, %v134
  %vm136 = vcmask 261120
  %v138 = vsel %vm136, %v135, 0
  %v140 = vsel %vm136, %v33, 0
  %142 = vmatprep.subr.mxu0 0.0
  %143 = vmatpush1.xpose.msra.mxu0 0.0
  %144 = vmatprep.subr.mxu0 0.0
  %145 = vmatpush1.xpose.msra.mxu0 0.0
  %146 = vmatprep.subr.mxu0 0.0
  %147 = vmatpush1.xpose.msra.mxu0 0.0
  %148 = vmatprep.subr.mxu0 0.0
  %149 = vmatpush1.xpose.msra.mxu0 0.0
  %150 = vmatprep.subr.mxu0 0.0
  %151 = vmatpush1.xpose.msra.mxu0 0.0
  %152 = vmatprep.subr.mxu0 0.0
  %153 = vmatpush1.xpose.msra.mxu0 0.0
  %154 = vmatprep.subr.mxu0 0.0
  %155 = vmatpush1.xpose.msra.mxu0 0.0
  %156 = vmatprep.subr.mxu0 0.0
  %157 = vmatpush1.xpose.msra.mxu0 0.0
  %158 = vmatprep.subr.mxu0 0.0
  %159 = vmatpush1.xpose.msra.mxu0 0.0
  %160 = vmatprep.subr.mxu0 0.0
  %161 = vmatpush1.xpose.msra.mxu0 0.0
  %162 = vmatprep.subr.mxu0 0.0
  %163 = vmatpush1.xpose.msra.mxu0 0.0
  %164 = vmatprep.subr.mxu0 0.0
  %165 = vmatpush1.xpose.msra.mxu0 0.0
  %166 = vmatprep.subr.mxu0 0.0
  %167 = vmatpush1.xpose.msra.mxu0 0.0
  %168 = vmatprep.subr.mxu0 0.0
  %169 = vmatpush1.xpose.msra.mxu0 0.0
  %170 = vmatprep.subr.mxu0 0.0
  %171 = vmatpush1.xpose.msra.mxu0 0.0
  %172 = vmatprep.subr.mxu0 0.0
  %173 = vmatpush1.xpose.msra.mxu0 %v140
  %174 = vmatprep.subr.mxu0 0.0
  %175 = vmatpush2.xpose.msra.mxu0 0.0
  %176 = vmatprep.subr.mxu0 0.0
  %177 = vmatpush2.xpose.msra.mxu0 0.0
  %178 = vmatprep.subr.mxu0 0.0
  %179 = vmatpush2.xpose.msra.mxu0 0.0
  %180 = vmatprep.subr.mxu0 0.0
  %181 = vmatpush2.xpose.msra.mxu0 0.0
  %182 = vmatprep.subr.mxu0 0.0
  %183 = vmatpush2.xpose.msra.mxu0 0.0
  %184 = vmatprep.subr.mxu0 0.0
  %185 = vmatpush2.xpose.msra.mxu0 0.0
  %186 = vmatprep.subr.mxu0 0.0
  %187 = vmatpush2.xpose.msra.mxu0 0.0
  %188 = vmatprep.subr.mxu0 0.0
  %189 = vmatpush2.xpose.msra.mxu0 0.0
  %190 = vmatprep.subr.mxu0 0.0
  %191 = vmatpush2.xpose.msra.mxu0 0.0
  %192 = vmatprep.subr.mxu0 0.0
  %193 = vmatpush2.xpose.msra.mxu0 0.0
  %194 = vmatprep.subr.mxu0 0.0
  %195 = vmatpush2.xpose.msra.mxu0 0.0
  %196 = vmatprep.subr.mxu0 0.0
  %197 = vmatpush2.xpose.msra.mxu0 0.0
  %198 = vmatprep.subr.mxu0 0.0
  %199 = vmatpush2.xpose.msra.mxu0 0.0
  %200 = vmatprep.subr.mxu0 0.0
  %201 = vmatpush2.xpose.msra.mxu0 0.0
  %202 = vmatprep.subr.mxu0 0.0
  %203 = vmatpush2.xpose.msra.mxu0 0.0
  %204 = vmatprep.subr.mxu0 0.0
  %205 = vmatpush2.xpose.msra.mxu0 0.0
  %206 = vmatprep.mubr.f32.mxu0 0.0
  %207 = vmatmul.mubr.f32.gmra.mxu0 %v138
  %v208 = vpop.f32.mrf.mxu0
  %v209 = vadd.f32 0.0, %v208
  %v210 = vpop.f32.mrf.mxu0
  %211 = vdwg.mxu0
  %v212 = vmul.f32 %v209, %v209
  %vm213 = vcmask 24576
  %v214 = vsel %vm213, %v212, 0.0
  %215 = vadd.xlane.f32.xlu0 %v214
  %v216 = vpop.xlane.xlu0 %215
  %v217 = vrot.slane %v216, 4
  %v218 = vadd.f32 %v216, %v217
  %v219 = vrot.slane %v218, 2
  %v220 = vadd.f32 %v218, %v219
  %v221 = vrot.slane %v220, 1
  %v222 = vadd.f32 %v220, %v221
  %s223 = vtos %v222
  %v224 = vstv %s223
  %v225 = vrsqrt.pop %v224
  %v226 = vmul.f32 %v224, %v225
  %vm227 = vcmp.eq.f32.partialorder %v224, inf
  %v228 = vsel %vm227, %v224, %v226
  %vm229 = vcmp.eq.f32.partialorder %v224, 0.0
  %v230 = vand.u32 %v224, 2147483648
  %v231 = vsel %vm229, %v230, %v228
  %v232 = vadd.f32 %v231, 0.0001
  %v233 = vrcp.pop %v232
  %v234 = vmul.f32 %v209, %v233
  %v235 = vmul.f32 %v234, %v209
  %v236 = vsel %vm213, %v235, 0.0
  %237 = vadd.xlane.f32.xlu0 %v236
  %v238 = vpop.xlane.xlu0 %237
  %v239 = vrot.slane %v238, 4
  %v240 = vadd.f32 %v238, %v239
  %v241 = vrot.slane %v240, 2
  %v242 = vadd.f32 %v240, %v241
  %v243 = vrot.slane %v242, 1
  %v244 = vadd.f32 %v242, %v243
  %s245 = vtos %v244
  %v246 = vstv %s245
  %v247 = vrcp.pop %v246
  %v248 = vmul.f32 %v33, %v247
  %v249 = vpack.c.bf16 %v248, %v248
  %vm250 = vcmask 254976
  %251 = vst.msk [vmem:[%s8] sm:$0x3] %vm250, %v249
  %v252 = vld [vmem:[%s1] sm:$0xf]
  %v253 = vld [vmem:[%s5] sm:$0x1]
  %v255 = vsel %vm35, %v253, 0
  %v258 = vsel %vm39, %v252, 0
  %260 = vmatprep.subr.mxu0 0.0
  %261 = vmatpush1.msra.mxu0 0.0
  %262 = vmatprep.subr.mxu0 0.0
  %263 = vmatpush1.msra.mxu0 0.0
  %264 = vmatprep.subr.mxu0 0.0
  %265 = vmatpush1.msra.mxu0 0.0
  %266 = vmatprep.subr.mxu0 0.0
  %267 = vmatpush1.msra.mxu0 0.0
  %268 = vmatprep.subr.mxu0 0.0
  %269 = vmatpush1.msra.mxu0 0.0
  %270 = vmatprep.subr.mxu0 0.0
  %271 = vmatpush1.msra.mxu0 0.0
  %272 = vmatprep.subr.mxu0 0.0
  %273 = vmatpush1.msra.mxu0 0.0
  %274 = vmatprep.subr.mxu0 0.0
  %275 = vmatpush1.msra.mxu0 0.0
  %276 = vmatprep.subr.mxu0 0.0
  %277 = vmatpush1.msra.mxu0 0.0
  %278 = vmatprep.subr.mxu0 0.0
  %279 = vmatpush1.msra.mxu0 0.0
  %280 = vmatprep.subr.mxu0 0.0
  %281 = vmatpush1.msra.mxu0 0.0
  %282 = vmatprep.subr.mxu0 0.0
  %283 = vmatpush1.msra.mxu0 0.0
  %284 = vmatprep.subr.mxu0 0.0
  %285 = vmatpush1.msra.mxu0 0.0
  %286 = vmatprep.subr.mxu0 0.0
  %287 = vmatpush1.msra.mxu0 0.0
  %288 = vmatprep.subr.mxu0 0.0
  %289 = vmatpush1.msra.mxu0 0.0
  %290 = vmatprep.subr.mxu0 0.0
  %291 = vmatpush1.msra.mxu0 %v258
  %292 = vmatprep.subr.mxu0 0.0
  %293 = vmatpush2.msra.mxu0 0.0
  %294 = vmatprep.subr.mxu0 0.0
  %295 = vmatpush2.msra.mxu0 0.0
  %296 = vmatprep.subr.mxu0 0.0
  %297 = vmatpush2.msra.mxu0 0.0
  %298 = vmatprep.subr.mxu0 0.0
  %299 = vmatpush2.msra.mxu0 0.0
  %300 = vmatprep.subr.mxu0 0.0
  %301 = vmatpush2.msra.mxu0 0.0
  %302 = vmatprep.subr.mxu0 0.0
  %303 = vmatpush2.msra.mxu0 0.0
  %304 = vmatprep.subr.mxu0 0.0
  %305 = vmatpush2.msra.mxu0 0.0
  %306 = vmatprep.subr.mxu0 0.0
  %307 = vmatpush2.msra.mxu0 0.0
  %308 = vmatprep.subr.mxu0 0.0
  %309 = vmatpush2.msra.mxu0 0.0
  %310 = vmatprep.subr.mxu0 0.0
  %311 = vmatpush2.msra.mxu0 0.0
  %312 = vmatprep.subr.mxu0 0.0
  %313 = vmatpush2.msra.mxu0 0.0
  %314 = vmatprep.subr.mxu0 0.0
  %315 = vmatpush2.msra.mxu0 0.0
  %316 = vmatprep.subr.mxu0 0.0
  %317 = vmatpush2.msra.mxu0 0.0
  %318 = vmatprep.subr.mxu0 0.0
  %319 = vmatpush2.msra.mxu0 0.0
  %320 = vmatprep.subr.mxu0 0.0
  %321 = vmatpush2.msra.mxu0 0.0
  %322 = vmatprep.subr.mxu0 0.0
  %323 = vmatpush2.msra.mxu0 0.0
  %324 = vmatprep.mubr.f32.mxu0 0.0
  %325 = vmatmul.mubr.f32.gmra.mxu0 %v255
  %v326 = vpop.f32.mrf.mxu0
  %v327 = vadd.f32 0.0, %v326
  %v328 = vpop.f32.mrf.mxu0
  %329 = vdwg.mxu0
  %v330 = vmul.f32 %v327, %v327
  %v331 = vsel %vm114, %v330, 0.0
  %332 = vadd.xlane.f32.xlu0 %v331
  %v333 = vpop.xlane.xlu0 %332
  %v334 = vrot.slane %v333, 4
  %v335 = vadd.f32 %v333, %v334
  %v336 = vrot.slane %v335, 2
  %v337 = vadd.f32 %v335, %v336
  %v338 = vrot.slane %v337, 1
  %v339 = vadd.f32 %v337, %v338
  %s340 = vtos %v339
  %v341 = vstv %s340
  %v342 = vrsqrt.pop %v341
  %v343 = vmul.f32 %v341, %v342
  %vm344 = vcmp.eq.f32.partialorder %v341, inf
  %v345 = vsel %vm344, %v341, %v343
  %vm346 = vcmp.eq.f32.partialorder %v341, 0.0
  %v347 = vand.u32 %v341, 2147483648
  %v348 = vsel %vm346, %v347, %v345
  %v349 = vadd.f32 %v348, 0.0001
  %v350 = vrcp.pop %v349
  %v351 = vmul.f32 %v327, %v350
  %v353 = vsel %vm136, %v351, 0
  %v355 = vsel %vm136, %v252, 0
  %357 = vmatprep.subr.mxu0 0.0
  %358 = vmatpush1.xpose.msra.mxu0 0.0
  %359 = vmatprep.subr.mxu0 0.0
  %360 = vmatpush1.xpose.msra.mxu0 0.0
  %361 = vmatprep.subr.mxu0 0.0
  %362 = vmatpush1.xpose.msra.mxu0 0.0
  %363 = vmatprep.subr.mxu0 0.0
  %364 = vmatpush1.xpose.msra.mxu0 0.0
  %365 = vmatprep.subr.mxu0 0.0
  %366 = vmatpush1.xpose.msra.mxu0 0.0
  %367 = vmatprep.subr.mxu0 0.0
  %368 = vmatpush1.xpose.msra.mxu0 0.0
  %369 = vmatprep.subr.mxu0 0.0
  %370 = vmatpush1.xpose.msra.mxu0 0.0
  %371 = vmatprep.subr.mxu0 0.0
  %372 = vmatpush1.xpose.msra.mxu0 0.0
  %373 = vmatprep.subr.mxu0 0.0
  %374 = vmatpush1.xpose.msra.mxu0 0.0
  %375 = vmatprep.subr.mxu0 0.0
  %376 = vmatpush1.xpose.msra.mxu0 0.0
  %377 = vmatprep.subr.mxu0 0.0
  %378 = vmatpush1.xpose.msra.mxu0 0.0
  %379 = vmatprep.subr.mxu0 0.0
  %380 = vmatpush1.xpose.msra.mxu0 0.0
  %381 = vmatprep.subr.mxu0 0.0
  %382 = vmatpush1.xpose.msra.mxu0 0.0
  %383 = vmatprep.subr.mxu0 0.0
  %384 = vmatpush1.xpose.msra.mxu0 0.0
  %385 = vmatprep.subr.mxu0 0.0
  %386 = vmatpush1.xpose.msra.mxu0 0.0
  %387 = vmatprep.subr.mxu0 0.0
  %388 = vmatpush1.xpose.msra.mxu0 %v355
  %389 = vmatprep.subr.mxu0 0.0
  %390 = vmatpush2.xpose.msra.mxu0 0.0
  %391 = vmatprep.subr.mxu0 0.0
  %392 = vmatpush2.xpose.msra.mxu0 0.0
  %393 = vmatprep.subr.mxu0 0.0
  %394 = vmatpush2.xpose.msra.mxu0 0.0
  %395 = vmatprep.subr.mxu0 0.0
  %396 = vmatpush2.xpose.msra.mxu0 0.0
  %397 = vmatprep.subr.mxu0 0.0
  %398 = vmatpush2.xpose.msra.mxu0 0.0
  %399 = vmatprep.subr.mxu0 0.0
  %400 = vmatpush2.xpose.msra.mxu0 0.0
  %401 = vmatprep.subr.mxu0 0.0
  %402 = vmatpush2.xpose.msra.mxu0 0.0
  %403 = vmatprep.subr.mxu0 0.0
  %404 = vmatpush2.xpose.msra.mxu0 0.0
  %405 = vmatprep.subr.mxu0 0.0
  %406 = vmatpush2.xpose.msra.mxu0 0.0
  %407 = vmatprep.subr.mxu0 0.0
  %408 = vmatpush2.xpose.msra.mxu0 0.0
  %409 = vmatprep.subr.mxu0 0.0
  %410 = vmatpush2.xpose.msra.mxu0 0.0
  %411 = vmatprep.subr.mxu0 0.0
  %412 = vmatpush2.xpose.msra.mxu0 0.0
  %413 = vmatprep.subr.mxu0 0.0
  %414 = vmatpush2.xpose.msra.mxu0 0.0
  %415 = vmatprep.subr.mxu0 0.0
  %416 = vmatpush2.xpose.msra.mxu0 0.0
  %417 = vmatprep.subr.mxu0 0.0
  %418 = vmatpush2.xpose.msra.mxu0 0.0
  %419 = vmatprep.subr.mxu0 0.0
  %420 = vmatpush2.xpose.msra.mxu0 0.0
  %421 = vmatprep.mubr.f32.mxu0 0.0
  %422 = vmatmul.mubr.f32.gmra.mxu0 %v353
  %v423 = vpop.f32.mrf.mxu0
  %v424 = vadd.f32 0.0, %v423
  %v425 = vpop.f32.mrf.mxu0
  %426 = vdwg.mxu0
  %v427 = vmul.f32 %v424, %v424
  %v428 = vsel %vm213, %v427, 0.0
  %429 = vadd.xlane.f32.xlu0 %v428
  %v430 = vpop.xlane.xlu0 %429
  %v431 = vrot.slane %v430, 4
  %v432 = vadd.f32 %v430, %v431
  %v433 = vrot.slane %v432, 2
  %v434 = vadd.f32 %v432, %v433
  %v435 = vrot.slane %v434, 1
  %v436 = vadd.f32 %v434, %v435
  %s437 = vtos %v436
  %v438 = vstv %s437
  %v439 = vrsqrt.pop %v438
  %v440 = vmul.f32 %v438, %v439
  %vm441 = vcmp.eq.f32.partialorder %v438, inf
  %v442 = vsel %vm441, %v438, %v440
  %vm443 = vcmp.eq.f32.partialorder %v438, 0.0
  %v444 = vand.u32 %v438, 2147483648
  %v445 = vsel %vm443, %v444, %v442
  %v446 = vadd.f32 %v445, 0.0001
  %v447 = vrcp.pop %v446
  %v448 = vmul.f32 %v424, %v447
  %v449 = vmul.f32 %v448, %v424
  %v450 = vsel %vm213, %v449, 0.0
  %451 = vadd.xlane.f32.xlu0 %v450
  %v452 = vpop.xlane.xlu0 %451
  %v453 = vrot.slane %v452, 4
  %v454 = vadd.f32 %v452, %v453
  %v455 = vrot.slane %v454, 2
  %v456 = vadd.f32 %v454, %v455
  %v457 = vrot.slane %v456, 1
  %v458 = vadd.f32 %v456, %v457
  %s459 = vtos %v458
  %v460 = vstv %s459
  %v461 = vrcp.pop %v460
  %v462 = vmul.f32 %v252, %v461
  %v463 = vpack.c.bf16 %v462, %v462
  %464 = vst.msk [vmem:[%s9] sm:$0x3] %vm250, %v463
  %v465 = vld [vmem:[%s2] sm:$0xff]
  %v466 = vld [vmem:[%s2 + $0x8] sm:$0xff]
  %v467 = vld [vmem:[%s6] sm:$0x1]
  %vm468 = vcmask 130048
  %v470 = vsel %vm468, %v467, 0
  %472 = vmatprep.subr.mxu0 0.0
  %473 = vmatpush1.msra.mxu0 0.0
  %474 = vmatprep.subr.mxu0 0.0
  %475 = vmatpush1.msra.mxu0 0.0
  %476 = vmatprep.subr.mxu0 0.0
  %477 = vmatpush1.msra.mxu0 0.0
  %478 = vmatprep.subr.mxu0 0.0
  %479 = vmatpush1.msra.mxu0 0.0
  %480 = vmatprep.subr.mxu0 0.0
  %481 = vmatpush1.msra.mxu0 0.0
  %482 = vmatprep.subr.mxu0 0.0
  %483 = vmatpush1.msra.mxu0 0.0
  %484 = vmatprep.subr.mxu0 0.0
  %485 = vmatpush1.msra.mxu0 0.0
  %486 = vmatprep.subr.mxu0 0.0
  %487 = vmatpush1.msra.mxu0 0.0
  %488 = vmatprep.subr.mxu0 0.0
  %489 = vmatpush1.msra.mxu0 0.0
  %490 = vmatprep.subr.mxu0 0.0
  %491 = vmatpush1.msra.mxu0 0.0
  %492 = vmatprep.subr.mxu0 0.0
  %493 = vmatpush1.msra.mxu0 0.0
  %494 = vmatprep.subr.mxu0 0.0
  %495 = vmatpush1.msra.mxu0 0.0
  %496 = vmatprep.subr.mxu0 0.0
  %497 = vmatpush1.msra.mxu0 0.0
  %498 = vmatprep.subr.mxu0 0.0
  %499 = vmatpush1.msra.mxu0 0.0
  %500 = vmatprep.subr.mxu0 0.0
  %501 = vmatpush1.msra.mxu0 %v466
  %502 = vmatprep.subr.mxu0 0.0
  %503 = vmatpush1.msra.mxu0 %v465
  %504 = vmatprep.subr.mxu0 0.0
  %505 = vmatpush2.msra.mxu0 0.0
  %506 = vmatprep.subr.mxu0 0.0
  %507 = vmatpush2.msra.mxu0 0.0
  %508 = vmatprep.subr.mxu0 0.0
  %509 = vmatpush2.msra.mxu0 0.0
  %510 = vmatprep.subr.mxu0 0.0
  %511 = vmatpush2.msra.mxu0 0.0
  %512 = vmatprep.subr.mxu0 0.0
  %513 = vmatpush2.msra.mxu0 0.0
  %514 = vmatprep.subr.mxu0 0.0
  %515 = vmatpush2.msra.mxu0 0.0
  %516 = vmatprep.subr.mxu0 0.0
  %517 = vmatpush2.msra.mxu0 0.0
  %518 = vmatprep.subr.mxu0 0.0
  %519 = vmatpush2.msra.mxu0 0.0
  %520 = vmatprep.subr.mxu0 0.0
  %521 = vmatpush2.msra.mxu0 0.0
  %522 = vmatprep.subr.mxu0 0.0
  %523 = vmatpush2.msra.mxu0 0.0
  %524 = vmatprep.subr.mxu0 0.0
  %525 = vmatpush2.msra.mxu0 0.0
  %526 = vmatprep.subr.mxu0 0.0
  %527 = vmatpush2.msra.mxu0 0.0
  %528 = vmatprep.subr.mxu0 0.0
  %529 = vmatpush2.msra.mxu0 0.0
  %530 = vmatprep.subr.mxu0 0.0
  %531 = vmatpush2.msra.mxu0 0.0
  %532 = vmatprep.subr.mxu0 0.0
  %533 = vmatpush2.msra.mxu0 0.0
  %534 = vmatprep.subr.mxu0 0.0
  %535 = vmatpush2.msra.mxu0 0.0
  %536 = vmatprep.mubr.f32.mxu0 0.0
  %537 = vmatmul.mubr.f32.gmra.mxu0 %v470
  %v538 = vpop.f32.mrf.mxu0
  %v539 = vadd.f32 0.0, %v538
  %v540 = vpop.f32.mrf.mxu0
  %541 = vdwg.mxu0
  %v542 = vmul.f32 %v539, %v539
  %v543 = vsel %vm114, %v542, 0.0
  %544 = vadd.xlane.f32.xlu0 %v543
  %v545 = vpop.xlane.xlu0 %544
  %v546 = vrot.slane %v545, 4
  %v547 = vadd.f32 %v545, %v546
  %v548 = vrot.slane %v547, 2
  %v549 = vadd.f32 %v547, %v548
  %v550 = vrot.slane %v549, 1
  %v551 = vadd.f32 %v549, %v550
  %s552 = vtos %v551
  %v553 = vstv %s552
  %v554 = vrsqrt.pop %v553
  %v555 = vmul.f32 %v553, %v554
  %vm556 = vcmp.eq.f32.partialorder %v553, inf
  %v557 = vsel %vm556, %v553, %v555
  %vm558 = vcmp.eq.f32.partialorder %v553, 0.0
  %v559 = vand.u32 %v553, 2147483648
  %v560 = vsel %vm558, %v559, %v557
  %v561 = vadd.f32 %v560, 0.0001
  %v562 = vrcp.pop %v561
  %v563 = vmul.f32 %v539, %v562
  %v565 = vsel %vm136, %v563, 0
  %v568 = vsel %vm136, %v465, 0
  %v571 = vsel %vm136, %v466, 0
  %573 = vmatprep.subr.mxu0 0.0
  %574 = vmatpush1.xpose.msra.mxu0 0.0
  %575 = vmatprep.subr.mxu0 0.0
  %576 = vmatpush1.xpose.msra.mxu0 0.0
  %577 = vmatprep.subr.mxu0 0.0
  %578 = vmatpush1.xpose.msra.mxu0 0.0
  %579 = vmatprep.subr.mxu0 0.0
  %580 = vmatpush1.xpose.msra.mxu0 0.0
  %581 = vmatprep.subr.mxu0 0.0
  %582 = vmatpush1.xpose.msra.mxu0 0.0
  %583 = vmatprep.subr.mxu0 0.0
  %584 = vmatpush1.xpose.msra.mxu0 0.0
  %585 = vmatprep.subr.mxu0 0.0
  %586 = vmatpush1.xpose.msra.mxu0 0.0
  %587 = vmatprep.subr.mxu0 0.0
  %588 = vmatpush1.xpose.msra.mxu0 0.0
  %589 = vmatprep.subr.mxu0 0.0
  %590 = vmatpush1.xpose.msra.mxu0 0.0
  %591 = vmatprep.subr.mxu0 0.0
  %592 = vmatpush1.xpose.msra.mxu0 0.0
  %593 = vmatprep.subr.mxu0 0.0
  %594 = vmatpush1.xpose.msra.mxu0 0.0
  %595 = vmatprep.subr.mxu0 0.0
  %596 = vmatpush1.xpose.msra.mxu0 0.0
  %597 = vmatprep.subr.mxu0 0.0
  %598 = vmatpush1.xpose.msra.mxu0 0.0
  %599 = vmatprep.subr.mxu0 0.0
  %600 = vmatpush1.xpose.msra.mxu0 0.0
  %601 = vmatprep.subr.mxu0 0.0
  %602 = vmatpush1.xpose.msra.mxu0 %v571
  %603 = vmatprep.subr.mxu0 0.0
  %604 = vmatpush1.xpose.msra.mxu0 %v568
  %605 = vmatprep.subr.mxu0 0.0
  %606 = vmatpush2.xpose.msra.mxu0 0.0
  %607 = vmatprep.subr.mxu0 0.0
  %608 = vmatpush2.xpose.msra.mxu0 0.0
  %609 = vmatprep.subr.mxu0 0.0
  %610 = vmatpush2.xpose.msra.mxu0 0.0
  %611 = vmatprep.subr.mxu0 0.0
  %612 = vmatpush2.xpose.msra.mxu0 0.0
  %613 = vmatprep.subr.mxu0 0.0
  %614 = vmatpush2.xpose.msra.mxu0 0.0
  %615 = vmatprep.subr.mxu0 0.0
  %616 = vmatpush2.xpose.msra.mxu0 0.0
  %617 = vmatprep.subr.mxu0 0.0
  %618 = vmatpush2.xpose.msra.mxu0 0.0
  %619 = vmatprep.subr.mxu0 0.0
  %620 = vmatpush2.xpose.msra.mxu0 0.0
  %621 = vmatprep.subr.mxu0 0.0
  %622 = vmatpush2.xpose.msra.mxu0 0.0
  %623 = vmatprep.subr.mxu0 0.0
  %624 = vmatpush2.xpose.msra.mxu0 0.0
  %625 = vmatprep.subr.mxu0 0.0
  %626 = vmatpush2.xpose.msra.mxu0 0.0
  %627 = vmatprep.subr.mxu0 0.0
  %628 = vmatpush2.xpose.msra.mxu0 0.0
  %629 = vmatprep.subr.mxu0 0.0
  %630 = vmatpush2.xpose.msra.mxu0 0.0
  %631 = vmatprep.subr.mxu0 0.0
  %632 = vmatpush2.xpose.msra.mxu0 0.0
  %633 = vmatprep.subr.mxu0 0.0
  %634 = vmatpush2.xpose.msra.mxu0 0.0
  %635 = vmatprep.subr.mxu0 0.0
  %636 = vmatpush2.xpose.msra.mxu0 0.0
  %637 = vmatprep.mubr.f32.mxu0 0.0
  %638 = vmatmul.mubr.f32.gmra.mxu0 %v565
  %v639 = vpop.f32.mrf.mxu0
  %v640 = vadd.f32 0.0, %v639
  %v641 = vpop.f32.mrf.mxu0
  %642 = vdwg.mxu0
  %v643 = vmul.f32 %v640, %v640
  %vm644 = vcmask 122880
  %v645 = vsel %vm644, %v643, 0.0
  %646 = vadd.xlane.f32.xlu0 %v645
  %v647 = vpop.xlane.xlu0 %646
  %v648 = vrot.slane %v647, 4
  %v649 = vadd.f32 %v647, %v648
  %v650 = vrot.slane %v649, 2
  %v651 = vadd.f32 %v649, %v650
  %v652 = vrot.slane %v651, 1
  %v653 = vadd.f32 %v651, %v652
  %s654 = vtos %v653
  %v655 = vstv %s654
  %v656 = vrsqrt.pop %v655
  %v657 = vmul.f32 %v655, %v656
  %vm658 = vcmp.eq.f32.partialorder %v655, inf
  %v659 = vsel %vm658, %v655, %v657
  %vm660 = vcmp.eq.f32.partialorder %v655, 0.0
  %v661 = vand.u32 %v655, 2147483648
  %v662 = vsel %vm660, %v661, %v659
  %v663 = vadd.f32 %v662, 0.0001
  %v664 = vrcp.pop %v663
  %v665 = vmul.f32 %v640, %v664
  %v666 = vmul.f32 %v665, %v640
  %v667 = vsel %vm644, %v666, 0.0
  %668 = vadd.xlane.f32.xlu0 %v667
  %v669 = vpop.xlane.xlu0 %668
  %v670 = vrot.slane %v669, 4
  %v671 = vadd.f32 %v669, %v670
  %v672 = vrot.slane %v671, 2
  %v673 = vadd.f32 %v671, %v672
  %v674 = vrot.slane %v673, 1
  %v675 = vadd.f32 %v673, %v674
  %s676 = vtos %v675
  %v677 = vstv %s676
  %v678 = vrcp.pop %v677
  %v679 = vmul.f32 %v465, %v678
  %v680 = vmul.f32 %v466, %v678
  %v681 = vpack.c.bf16 %v680, %v679
  %v683 = vunpack.c.l.b16 %v681
  %v684 = vunpack.c.h.b16 %v681
  %v685 = vpack.c.b16 %v683, %v683
  %v686 = vpack.c.b16 %v684, %v684
  %vm689 = vcmask 257024
  %690 = vst.msk [vmem:[%s10] sm:$0xf] %vm689, %v685
  %691 = vst.msk [vmem:[%s10 + $0x4] sm:$0xf] %vm689, %v686
  %v692 = vld [vmem:[%s3] sm:$0xff]
  %v693 = vld [vmem:[%s3 + $0x8] sm:$0xff]
  %v694 = vld [vmem:[%s3 + $0x10] sm:$0xff]
  %v695 = vld [vmem:[%s3 + $0x18] sm:$0xff]
  %v696 = vld [vmem:[%s7] sm:$0x1]
  %v698 = vsel %vm136, %v696, 0
  %700 = vmatprep.subr.mxu0 0.0
  %701 = vmatpush1.msra.mxu0 0.0
  %702 = vmatprep.subr.mxu0 0.0
  %703 = vmatpush1.msra.mxu0 0.0
  %704 = vmatprep.subr.mxu0 0.0
  %705 = vmatpush1.msra.mxu0 0.0
  %706 = vmatprep.subr.mxu0 0.0
  %707 = vmatpush1.msra.mxu0 0.0
  %708 = vmatprep.subr.mxu0 0.0
  %709 = vmatpush1.msra.mxu0 0.0
  %710 = vmatprep.subr.mxu0 0.0
  %711 = vmatpush1.msra.mxu0 0.0
  %712 = vmatprep.subr.mxu0 0.0
  %713 = vmatpush1.msra.mxu0 0.0
  %714 = vmatprep.subr.mxu0 0.0
  %715 = vmatpush1.msra.mxu0 0.0
  %716 = vmatprep.subr.mxu0 0.0
  %717 = vmatpush1.msra.mxu0 0.0
  %718 = vmatprep.subr.mxu0 0.0
  %719 = vmatpush1.msra.mxu0 0.0
  %720 = vmatprep.subr.mxu0 0.0
  %721 = vmatpush1.msra.mxu0 0.0
  %722 = vmatprep.subr.mxu0 0.0
  %723 = vmatpush1.msra.mxu0 0.0
  %724 = vmatprep.subr.mxu0 0.0
  %725 = vmatpush1.msra.mxu0 %v695
  %726 = vmatprep.subr.mxu0 0.0
  %727 = vmatpush1.msra.mxu0 %v694
  %728 = vmatprep.subr.mxu0 0.0
  %729 = vmatpush1.msra.mxu0 %v693
  %730 = vmatprep.subr.mxu0 0.0
  %731 = vmatpush1.msra.mxu0 %v692
  %732 = vmatprep.subr.mxu0 0.0
  %733 = vmatpush2.msra.mxu0 0.0
  %734 = vmatprep.subr.mxu0 0.0
  %735 = vmatpush2.msra.mxu0 0.0
  %736 = vmatprep.subr.mxu0 0.0
  %737 = vmatpush2.msra.mxu0 0.0
  %738 = vmatprep.subr.mxu0 0.0
  %739 = vmatpush2.msra.mxu0 0.0
  %740 = vmatprep.subr.mxu0 0.0
  %741 = vmatpush2.msra.mxu0 0.0
  %742 = vmatprep.subr.mxu0 0.0
  %743 = vmatpush2.msra.mxu0 0.0
  %744 = vmatprep.subr.mxu0 0.0
  %745 = vmatpush2.msra.mxu0 0.0
  %746 = vmatprep.subr.mxu0 0.0
  %747 = vmatpush2.msra.mxu0 0.0
  %748 = vmatprep.subr.mxu0 0.0
  %749 = vmatpush2.msra.mxu0 0.0
  %750 = vmatprep.subr.mxu0 0.0
  %751 = vmatpush2.msra.mxu0 0.0
  %752 = vmatprep.subr.mxu0 0.0
  %753 = vmatpush2.msra.mxu0 0.0
  %754 = vmatprep.subr.mxu0 0.0
  %755 = vmatpush2.msra.mxu0 0.0
  %756 = vmatprep.subr.mxu0 0.0
  %757 = vmatpush2.msra.mxu0 0.0
  %758 = vmatprep.subr.mxu0 0.0
  %759 = vmatpush2.msra.mxu0 0.0
  %760 = vmatprep.subr.mxu0 0.0
  %761 = vmatpush2.msra.mxu0 0.0
  %762 = vmatprep.subr.mxu0 0.0
  %763 = vmatpush2.msra.mxu0 0.0
  %764 = vmatprep.mubr.f32.mxu0 0.0
  %765 = vmatmul.mubr.f32.gmra.mxu0 %v698
  %v766 = vpop.f32.mrf.mxu0
  %v767 = vadd.f32 0.0, %v766
  %v768 = vpop.f32.mrf.mxu0
  %769 = vdwg.mxu0
  %v770 = vmul.f32 %v767, %v767
  %v771 = vsel %vm644, %v770, 0.0
  %772 = vadd.xlane.f32.xlu0 %v771
  %v773 = vpop.xlane.xlu0 %772
  %v774 = vrot.slane %v773, 4
  %v775 = vadd.f32 %v773, %v774
  %v776 = vrot.slane %v775, 2
  %v777 = vadd.f32 %v775, %v776
  %v778 = vrot.slane %v777, 1
  %v779 = vadd.f32 %v777, %v778
  %s780 = vtos %v779
  %v781 = vstv %s780
  %v782 = vrsqrt.pop %v781
  %v783 = vmul.f32 %v781, %v782
  %vm784 = vcmp.eq.f32.partialorder %v781, inf
  %v785 = vsel %vm784, %v781, %v783
  %vm786 = vcmp.eq.f32.partialorder %v781, 0.0
  %v787 = vand.u32 %v781, 2147483648
  %v788 = vsel %vm786, %v787, %v785
  %v789 = vadd.f32 %v788, 0.0001
  %v790 = vrcp.pop %v789
  %v791 = vmul.f32 %v767, %v790
  %v793 = vsel %vm468, %v791, 0
  %v796 = vsel %vm468, %v692, 0
  %v799 = vsel %vm468, %v693, 0
  %v802 = vsel %vm468, %v694, 0
  %v805 = vsel %vm468, %v695, 0
  %807 = vmatprep.subr.mxu0 0.0
  %808 = vmatpush1.xpose.msra.mxu0 0.0
  %809 = vmatprep.subr.mxu0 0.0
  %810 = vmatpush1.xpose.msra.mxu0 0.0
  %811 = vmatprep.subr.mxu0 0.0
  %812 = vmatpush1.xpose.msra.mxu0 0.0
  %813 = vmatprep.subr.mxu0 0.0
  %814 = vmatpush1.xpose.msra.mxu0 0.0
  %815 = vmatprep.subr.mxu0 0.0
  %816 = vmatpush1.xpose.msra.mxu0 0.0
  %817 = vmatprep.subr.mxu0 0.0
  %818 = vmatpush1.xpose.msra.mxu0 0.0
  %819 = vmatprep.subr.mxu0 0.0
  %820 = vmatpush1.xpose.msra.mxu0 0.0
  %821 = vmatprep.subr.mxu0 0.0
  %822 = vmatpush1.xpose.msra.mxu0 0.0
  %823 = vmatprep.subr.mxu0 0.0
  %824 = vmatpush1.xpose.msra.mxu0 0.0
  %825 = vmatprep.subr.mxu0 0.0
  %826 = vmatpush1.xpose.msra.mxu0 0.0
  %827 = vmatprep.subr.mxu0 0.0
  %828 = vmatpush1.xpose.msra.mxu0 0.0
  %829 = vmatprep.subr.mxu0 0.0
  %830 = vmatpush1.xpose.msra.mxu0 0.0
  %831 = vmatprep.subr.mxu0 0.0
  %832 = vmatpush1.xpose.msra.mxu0 %v805
  %833 = vmatprep.subr.mxu0 0.0
  %834 = vmatpush1.xpose.msra.mxu0 %v802
  %835 = vmatprep.subr.mxu0 0.0
  %836 = vmatpush1.xpose.msra.mxu0 %v799
  %837 = vmatprep.subr.mxu0 0.0
  %838 = vmatpush1.xpose.msra.mxu0 %v796
  %839 = vmatprep.subr.mxu0 0.0
  %840 = vmatpush2.xpose.msra.mxu0 0.0
  %841 = vmatprep.subr.mxu0 0.0
  %842 = vmatpush2.xpose.msra.mxu0 0.0
  %843 = vmatprep.subr.mxu0 0.0
  %844 = vmatpush2.xpose.msra.mxu0 0.0
  %845 = vmatprep.subr.mxu0 0.0
  %846 = vmatpush2.xpose.msra.mxu0 0.0
  %847 = vmatprep.subr.mxu0 0.0
  %848 = vmatpush2.xpose.msra.mxu0 0.0
  %849 = vmatprep.subr.mxu0 0.0
  %850 = vmatpush2.xpose.msra.mxu0 0.0
  %851 = vmatprep.subr.mxu0 0.0
  %852 = vmatpush2.xpose.msra.mxu0 0.0
  %853 = vmatprep.subr.mxu0 0.0
  %854 = vmatpush2.xpose.msra.mxu0 0.0
  %855 = vmatprep.subr.mxu0 0.0
  %856 = vmatpush2.xpose.msra.mxu0 0.0
  %857 = vmatprep.subr.mxu0 0.0
  %858 = vmatpush2.xpose.msra.mxu0 0.0
  %859 = vmatprep.subr.mxu0 0.0
  %860 = vmatpush2.xpose.msra.mxu0 0.0
  %861 = vmatprep.subr.mxu0 0.0
  %862 = vmatpush2.xpose.msra.mxu0 0.0
  %863 = vmatprep.subr.mxu0 0.0
  %864 = vmatpush2.xpose.msra.mxu0 0.0
  %865 = vmatprep.subr.mxu0 0.0
  %866 = vmatpush2.xpose.msra.mxu0 0.0
  %867 = vmatprep.subr.mxu0 0.0
  %868 = vmatpush2.xpose.msra.mxu0 0.0
  %869 = vmatprep.subr.mxu0 0.0
  %870 = vmatpush2.xpose.msra.mxu0 0.0
  %871 = vmatprep.mubr.f32.mxu0 0.0
  %872 = vmatmul.mubr.f32.gmra.mxu0 %v793
  %v873 = vpop.f32.mrf.mxu0
  %v874 = vadd.f32 0.0, %v873
  %v875 = vpop.f32.mrf.mxu0
  %876 = vdwg.mxu0
  %v877 = vmul.f32 %v874, %v874
  %v878 = vsel %vm114, %v877, 0.0
  %879 = vadd.xlane.f32.xlu0 %v878
  %v880 = vpop.xlane.xlu0 %879
  %v881 = vrot.slane %v880, 4
  %v882 = vadd.f32 %v880, %v881
  %v883 = vrot.slane %v882, 2
  %v884 = vadd.f32 %v882, %v883
  %v885 = vrot.slane %v884, 1
  %v886 = vadd.f32 %v884, %v885
  %s887 = vtos %v886
  %v888 = vstv %s887
  %v889 = vrsqrt.pop %v888
  %v890 = vmul.f32 %v888, %v889
  %vm891 = vcmp.eq.f32.partialorder %v888, inf
  %v892 = vsel %vm891, %v888, %v890
  %vm893 = vcmp.eq.f32.partialorder %v888, 0.0
  %v894 = vand.u32 %v888, 2147483648
  %v895 = vsel %vm893, %v894, %v892
  %v896 = vadd.f32 %v895, 0.0001
  %v897 = vrcp.pop %v896
  %v898 = vmul.f32 %v874, %v897
  %v899 = vmul.f32 %v898, %v874
  %v900 = vsel %vm114, %v899, 0.0
  %901 = vadd.xlane.f32.xlu0 %v900
  %v902 = vpop.xlane.xlu0 %901
  %v903 = vrot.slane %v902, 4
  %v904 = vadd.f32 %v902, %v903
  %v905 = vrot.slane %v904, 2
  %v906 = vadd.f32 %v904, %v905
  %v907 = vrot.slane %v906, 1
  %v908 = vadd.f32 %v906, %v907
  %s909 = vtos %v908
  %v910 = vstv %s909
  %v911 = vrcp.pop %v910
  %v912 = vmul.f32 %v692, %v911
  %v913 = vmul.f32 %v693, %v911
  %v914 = vmul.f32 %v694, %v911
  %v915 = vmul.f32 %v695, %v911
  %v916 = vpack.c.bf16 %v913, %v912
  %v917 = vpack.c.bf16 %v915, %v914
  %v920 = vunpack.c.l.b16 %v916
  %v921 = vunpack.c.h.b16 %v916
  %v922 = vunpack.c.l.b16 %v917
  %v923 = vunpack.c.h.b16 %v917
  %v924 = vpack.c.b16 %v920, %v920
  %v925 = vpack.c.b16 %v921, %v921
  %v926 = vpack.c.b16 %v922, %v922
  %v927 = vpack.c.b16 %v923, %v923
  %vm932 = vcmask 125952
  %933 = vst.msk [vmem:[%s11] sm:$0xf] %vm932, %v924
  %934 = vst.msk [vmem:[%s11 + $0x4] sm:$0xf] %vm932, %v925
  %935 = vst.msk [vmem:[%s11 + $0x8] sm:$0xf] %vm932, %v926
  %936 = vst.msk [vmem:[%s11 + $0xc] sm:$0xf] %vm932, %v927
  // Predicated region
  $region34: #{self_attention_forward.2} parent=0 // pred_check
    _
  $region35: #{self_attention_forward.2} parent=0 // pred_check_branch
    %938 = sbr.rel (0) target = $region37
  $region36: #{self_attention_forward.2} parent=0 // pred_region
    _
  $region37: #{self_attention_forward.2} parent=0 // pred_fallthru
    _
  // Predicated region
  $region38: #{self_attention_forward.2} parent=0 // pred_check
    _
  $region39: #{self_attention_forward.2} parent=0 // pred_check_branch
    %940 = sbr.rel (0) target = $region41
  $region40: #{self_attention_forward.2} parent=0 // pred_region
    _
  $region41: #{self_attention_forward.2} parent=0 // pred_fallthru
    _
  // Predicated region
  $region42: #{self_attention_forward.2} parent=0 // pred_check
    _
  $region43: #{self_attention_forward.2} parent=0 // pred_check_branch
    %942 = sbr.rel (0) target = $region45
  $region44: #{self_attention_forward.2} parent=0 // pred_region
    _
  $region45: #{self_attention_forward.2} parent=0 // pred_fallthru
    _
  // Predicated region
  $region46: #{self_attention_forward.2} parent=0 // pred_check
    _
  $region47: #{self_attention_forward.2} parent=0 // pred_check_branch
    %944 = sbr.rel (0) target = $region49
  $region48: #{self_attention_forward.2} parent=0 // pred_region
    _
  $region49: #{self_attention_forward.2} parent=0 // pred_fallthru
    _
  // Predicated region
  $region50: #{self_attention_forward.2} parent=0 // pred_check
    _
  $region51: #{self_attention_forward.2} parent=0 // pred_check_branch
    %946 = sbr.rel (0) target = $region53
  $region52: #{self_attention_forward.2} parent=0 // pred_region
    _
  $region53: #{self_attention_forward.2} parent=0 // pred_fallthru
    _
  // Predicated region
  $region54: #{self_attention_forward.2} parent=0 // pred_check
    _
  $region55: #{self_attention_forward.2} parent=0 // pred_check_branch
    %948 = sbr.rel (0) target = $region57
  $region56: #{self_attention_forward.2} parent=0 // pred_region
    _
  $region57: #{self_attention_forward.2} parent=0 // pred_fallthru
    _
  // Predicated region
  $region58: #{self_attention_forward.2} parent=0 // pred_check
    _
  $region59: #{self_attention_forward.2} parent=0 // pred_check_branch
    %950 = sbr.rel (0) target = $region61
  $region60: #{self_attention_forward.2} parent=0 // pred_region
    _
  $region61: #{self_attention_forward.2} parent=0 // pred_fallthru
    _
  // Predicated region
  $region62: #{self_attention_forward.2} parent=0 // pred_check
    _
  $region63: #{self_attention_forward.2} parent=0 // pred_check_branch
    %952 = sbr.rel (0) target = $region65
  $region64: #{self_attention_forward.2} parent=0 // pred_region
    _
  $region65: #{self_attention_forward.2} parent=0 // pred_fallthru
    _

// kernel: self_attention_forward.3
$region0: #{self_attention_forward.3}
  #allocation0 [shape = 'u32[]', space=smem, size = 0x4, offset = 0x4, fixed_abs, tag = 'smem constant byte address 0x4 - core index']
  #allocation1 [shape = 'u32[144,128]{1,0:T(1,128)}', space=vmem, size = 0x12000, scoped, tag = 'internal scratch']
  #allocation2 [shape = 'f32[1,1]{1,0:T(1,128)S(6)}', space=smem, size = 0x200, scoped, tag = 'scoped memory for self_attention_forward.3']
  %s0 = inlined_call_operand.vmem [shape: f32[2,32,256], index: 0, kind: input, shape index: {}]
  %s1 = inlined_call_operand.vmem [shape: bf16[4,32], index: 1, kind: input, shape index: {}]
  %s2 = inlined_call_operand.vmem [shape: bf16[4,32], index: 2, kind: input, shape index: {}]
  %s3 = inlined_call_operand.vmem [shape: bf16[16,32], index: 3, kind: input, shape index: {}]
  %s4 = inlined_call_operand.vmem [shape: bf16[32,16], index: 4, kind: input, shape index: {}]
  %s5 = inlined_call_operand.<no memory space> [shape: f32[1,1], index: 5, kind: input, shape index: {}]
  %s6 = inlined_call_operand.vmem [shape: f32[2,32,256], index: 6, kind: output, shape index: {}]
  %s7 = sld [smem:[#allocation0]]
  $region57: #{self_attention_forward.3} parent=0
    _
  %s9 = ssub.s32 1, %s7
  %s10 = scalar_select 0, %s9, %s7
  %11 = sst [smem:[#allocation2]] %s5
  loop: start=0, step=1, limit=4
  $region2: #{self_attention_forward.3} parent=0 // loop_pre_header
    _
  $region3: #{self_attention_forward.3} parent=0 // loop_header
    %s13 = sphi 0, %s17
    %p14 = scmp.ge.s32.totalorder %s13, 4
    %s23 = sphi 0, %s25
    %s26 = sphi 0, %s23
    %s27 = sphi 0, %s26
    %s43 = sphi 0, %s27
    %s47 = sphi 0, %s47
    %s49 = sphi 0, %s47
    %s50 = sphi 0, %s49
    %s64 = sphi 0, %s50
    %s68 = sphi 0, %s68
    %s70 = sphi 0, %s68
    %s71 = sphi 0, %s70
    %s85 = sphi 0, %s71
    %s89 = sphi 0, %s89
    %s91 = sphi 0, %s89
    %s92 = sphi 0, %s91
    %s106 = sphi 0, %s92
    %s110 = sphi 0, %s110
    %s112 = sphi 0, %s110
    %s113 = sphi 0, %s112
    %s127 = sphi 0, %s113
    %s131 = sphi 0, %s131
    %s133 = sphi 0, %s131
    %s134 = sphi 0, %s133
    %s148 = sphi 0, %s134
    %s154 = sphi 0, %s156
    %s157 = sphi 0, %s154
    %s158 = sphi 0, %s157
    %s174 = sphi 0, %s158
  $region4: #{self_attention_forward.3} parent=0 // loop_header_branch
    %16 = sbr.rel (%p14) target = $region8
  $region5: #{self_attention_forward.3} parent=0 // loop_body
    %s18 = ssub.s32 %s13, 1
    %s19 = ssub.s32 %s13, 2
    %s20 = sadd.s32 %s13, 1
    %s21 = ssub.s32 %s13, %s20
    %p22 = scmp.eq.s32.totalorder %s21, 0
    %s24 = sadd.s32 %s23, 1
    %s25 = scalar_select %p22, %s23, %s24
    %p28 = pneg %p22
    %p29 = scmp.eq.s32.totalorder %s13, 1
    %p30 = por %p28, %p29
    %p31 = scmp.ne.s32.totalorder %s23, %s26
    %p32 = scmp.eq.s32.totalorder %s13, 0
    %p33 = por %p31, %p32
    %p34 = scmp.ne.s32.totalorder %s23, %s26
    %p35 = scmp.eq.s32.totalorder %s18, 1
    %p36 = por %p34, %p35
    %p37 = scmp.ne.s32.totalorder %s26, %s27
    %p38 = scmp.eq.s32.totalorder %s18, 0
    %p39 = por %p37, %p38
    %p40 = scmp.ne.s32.totalorder %s26, %s27
    %p41 = scmp.eq.s32.totalorder %s19, 1
    %p42 = por %p40, %p41
    %p44 = scmp.ne.s32.totalorder %s27, %s43
    %p45 = scmp.eq.s32.totalorder %s19, 0
    %p46 = por %p44, %p45
    %s48 = sadd.s32 %s47, 1
    %p51 = scmp.eq.s32.totalorder %s13, 1
    %p52 = scmp.ne.s32.totalorder %s47, %s49
    %p53 = scmp.eq.s32.totalorder %s13, 0
    %p54 = por %p52, %p53
    %p55 = scmp.ne.s32.totalorder %s47, %s49
    %p56 = scmp.eq.s32.totalorder %s18, 1
    %p57 = por %p55, %p56
    %p58 = scmp.ne.s32.totalorder %s49, %s50
    %p59 = scmp.eq.s32.totalorder %s18, 0
    %p60 = por %p58, %p59
    %p61 = scmp.ne.s32.totalorder %s49, %s50
    %p62 = scmp.eq.s32.totalorder %s19, 1
    %p63 = por %p61, %p62
    %p65 = scmp.ne.s32.totalorder %s50, %s64
    %p66 = scmp.eq.s32.totalorder %s19, 0
    %p67 = por %p65, %p66
    %s69 = sadd.s32 %s68, 1
    %p72 = scmp.eq.s32.totalorder %s13, 1
    %p73 = scmp.ne.s32.totalorder %s68, %s70
    %p74 = scmp.eq.s32.totalorder %s13, 0
    %p75 = por %p73, %p74
    %p76 = scmp.ne.s32.totalorder %s68, %s70
    %p77 = scmp.eq.s32.totalorder %s18, 1
    %p78 = por %p76, %p77
    %p79 = scmp.ne.s32.totalorder %s70, %s71
    %p80 = scmp.eq.s32.totalorder %s18, 0
    %p81 = por %p79, %p80
    %p82 = scmp.ne.s32.totalorder %s70, %s71
    %p83 = scmp.eq.s32.totalorder %s19, 1
    %p84 = por %p82, %p83
    %p86 = scmp.ne.s32.totalorder %s71, %s85
    %p87 = scmp.eq.s32.totalorder %s19, 0
    %p88 = por %p86, %p87
    %s90 = sadd.s32 %s89, 1
    %p93 = scmp.eq.s32.totalorder %s13, 1
    %p94 = scmp.ne.s32.totalorder %s89, %s91
    %p95 = scmp.eq.s32.totalorder %s13, 0
    %p96 = por %p94, %p95
    %p97 = scmp.ne.s32.totalorder %s89, %s91
    %p98 = scmp.eq.s32.totalorder %s18, 1
    %p99 = por %p97, %p98
    %p100 = scmp.ne.s32.totalorder %s91, %s92
    %p101 = scmp.eq.s32.totalorder %s18, 0
    %p102 = por %p100, %p101
    %p103 = scmp.ne.s32.totalorder %s91, %s92
    %p104 = scmp.eq.s32.totalorder %s19, 1
    %p105 = por %p103, %p104
    %p107 = scmp.ne.s32.totalorder %s92, %s106
    %p108 = scmp.eq.s32.totalorder %s19, 0
    %p109 = por %p107, %p108
    %s111 = sadd.s32 %s110, 1
    %p114 = scmp.eq.s32.totalorder %s13, 1
    %p115 = scmp.ne.s32.totalorder %s110, %s112
    %p116 = scmp.eq.s32.totalorder %s13, 0
    %p117 = por %p115, %p116
    %p118 = scmp.ne.s32.totalorder %s110, %s112
    %p119 = scmp.eq.s32.totalorder %s18, 1
    %p120 = por %p118, %p119
    %p121 = scmp.ne.s32.totalorder %s112, %s113
    %p122 = scmp.eq.s32.totalorder %s18, 0
    %p123 = por %p121, %p122
    %p124 = scmp.ne.s32.totalorder %s112, %s113
    %p125 = scmp.eq.s32.totalorder %s19, 1
    %p126 = por %p124, %p125
    %p128 = scmp.ne.s32.totalorder %s113, %s127
    %p129 = scmp.eq.s32.totalorder %s19, 0
    %p130 = por %p128, %p129
    %s132 = sadd.s32 %s131, 1
    %p135 = scmp.eq.s32.totalorder %s13, 1
    %p136 = scmp.ne.s32.totalorder %s131, %s133
    %p137 = scmp.eq.s32.totalorder %s13, 0
    %p138 = por %p136, %p137
    %p139 = scmp.ne.s32.totalorder %s131, %s133
    %p140 = scmp.eq.s32.totalorder %s18, 1
    %p141 = por %p139, %p140
    %p142 = scmp.ne.s32.totalorder %s133, %s134
    %p143 = scmp.eq.s32.totalorder %s18, 0
    %p144 = por %p142, %p143
    %p145 = scmp.ne.s32.totalorder %s133, %s134
    %p146 = scmp.eq.s32.totalorder %s19, 1
    %p147 = por %p145, %p146
    %p149 = scmp.ne.s32.totalorder %s134, %s148
    %p150 = scmp.eq.s32.totalorder %s19, 0
    %p151 = por %p149, %p150
    %s152 = ssub.s32 %s13, %s20
    %p153 = scmp.eq.s32.totalorder %s152, 0
    %s155 = sadd.s32 %s154, 1
    %s156 = scalar_select %p153, %s154, %s155
    %p159 = pneg %p153
    %p160 = scmp.eq.s32.totalorder %s13, 1
    %p161 = por %p159, %p160
    %p162 = scmp.ne.s32.totalorder %s154, %s157
    %p163 = scmp.eq.s32.totalorder %s13, 0
    %p164 = por %p162, %p163
    %p165 = scmp.ne.s32.totalorder %s154, %s157
    %p166 = scmp.eq.s32.totalorder %s18, 1
    %p167 = por %p165, %p166
    %p168 = scmp.ne.s32.totalorder %s157, %s158
    %p169 = scmp.eq.s32.totalorder %s18, 0
    %p170 = por %p168, %p169
    %p171 = scmp.ne.s32.totalorder %s157, %s158
    %p172 = scmp.eq.s32.totalorder %s19, 1
    %p173 = por %p171, %p172
    %p175 = scmp.ne.s32.totalorder %s158, %s174
    %p176 = scmp.eq.s32.totalorder %s19, 0
    %p177 = por %p175, %p176
    %p178 = scmp.le.s32.totalorder 1, %s13
    %p179 = scmp.lt.s32.totalorder %s13, 3
    %p180 = pnand %p178, %p179
    %p181 = pneg %p180
    // Predicated region
    $region9: #{self_attention_forward.3} parent=5 // pred_check
      _
    $region10: #{self_attention_forward.3} parent=5 // pred_check_branch
      %183 = sbr.rel (%p180) target = $region12
    $region11: #{self_attention_forward.3} parent=5 // pred_region
      %s184 = ssub.s32 %s13, 1
      // Predicated region
      $region13: #{self_attention_forward.3} parent=11 // pred_check
        %p185 = pneg %p60
      $region14: #{self_attention_forward.3} parent=11 // pred_check_branch
        %187 = sbr.rel (%p185) target = $region16
      $region15: #{self_attention_forward.3} parent=11 // pred_region
        _
      $region16: #{self_attention_forward.3} parent=11 // pred_fallthru
        _
      // Predicated region
      $region17: #{self_attention_forward.3} parent=11 // pred_check
        %p188 = pneg %p81
      $region18: #{self_attention_forward.3} parent=11 // pred_check_branch
        %190 = sbr.rel (%p188) target = $region20
      $region19: #{self_attention_forward.3} parent=11 // pred_region
        _
      $region20: #{self_attention_forward.3} parent=11 // pred_fallthru
        _
      // Predicated region
      $region21: #{self_attention_forward.3} parent=11 // pred_check
        %p191 = pneg %p102
      $region22: #{self_attention_forward.3} parent=11 // pred_check_branch
        %193 = sbr.rel (%p191) target = $region24
      $region23: #{self_attention_forward.3} parent=11 // pred_region
        _
      $region24: #{self_attention_forward.3} parent=11 // pred_fallthru
        _
      // Predicated region
      $region25: #{self_attention_forward.3} parent=11 // pred_check
        %p194 = pneg %p123
      $region26: #{self_attention_forward.3} parent=11 // pred_check_branch
        %196 = sbr.rel (%p194) target = $region28
      $region27: #{self_attention_forward.3} parent=11 // pred_region
        _
      $region28: #{self_attention_forward.3} parent=11 // pred_fallthru
        _
      // Predicated region
      $region29: #{self_attention_forward.3} parent=11 // pred_check
        %p197 = pneg %p144
      $region30: #{self_attention_forward.3} parent=11 // pred_check_branch
        %199 = sbr.rel (%p197) target = $region32
      $region31: #{self_attention_forward.3} parent=11 // pred_region
        _
      $region32: #{self_attention_forward.3} parent=11 // pred_fallthru
        _
    $region12: #{self_attention_forward.3} parent=5 // pred_fallthru
      _
    %p200 = scmp.lt.s32.totalorder %s13, 2
    // Predicated region
    $region33: #{self_attention_forward.3} parent=5 // pred_check
      %p201 = pneg %p200
    $region34: #{self_attention_forward.3} parent=5 // pred_check_branch
      %203 = sbr.rel (%p201) target = $region36
    $region35: #{self_attention_forward.3} parent=5 // pred_region
      // Predicated region
      $region37: #{self_attention_forward.3} parent=35 // pred_check
        %p204 = pneg %p33
      $region38: #{self_attention_forward.3} parent=35 // pred_check_branch
        %206 = sbr.rel (%p204) target = $region40
      $region39: #{self_attention_forward.3} parent=35 // pred_region
        %p207 = scmp.lt.s32.totalorder %s13, 1
        %s208 = scalar_select %p207, %s13, 1
        %s209 = smul.addr %s208, 8
        %s210 = smul.addr %s209, 8
        %s211 = scalar_lea.vmem %s0, %s210
      $region40: #{self_attention_forward.3} parent=35 // pred_fallthru
        _
    $region36: #{self_attention_forward.3} parent=5 // pred_fallthru
      _
    %p212 = scmp.le.s32.totalorder 1, %s13
    %p213 = scmp.lt.s32.totalorder %s13, 3
    %p214 = pnand %p212, %p213
    %p215 = pneg %p214
    // Predicated region
    $region41: #{self_attention_forward.3} parent=5 // pred_check
      _
    $region42: #{self_attention_forward.3} parent=5 // pred_check_branch
      %217 = sbr.rel (%p214) target = $region44
    $region43: #{self_attention_forward.3} parent=5 // pred_region
      %s218 = ssub.s32 %s13, 1
      %p219 = scmp.lt.s32.totalorder %s18, 1
      %s220 = scalar_select %p219, %s18, 1
      %s221 = smul.addr %s220, 8
      %s222 = smul.addr %s221, 8
      %s223 = scalar_lea.vmem %s0, %s222
      %p224 = pneg %p39
      %p225 = pneg %p36
      %p226 = pneg %p60
      %p227 = pneg %p57
      %p228 = pneg %p81
      %p229 = pneg %p78
      %p230 = pneg %p102
      %p231 = pneg %p99
      %p232 = pneg %p123
      %p233 = pneg %p120
      %p234 = pneg %p144
      %p235 = pneg %p141
      %p236 = pneg %p170
      %p237 = pneg %p167
      %p238 = scmp.lt.s32.totalorder %s18, 1
      %s239 = scalar_select %p238, %s18, 1
      %s240 = smul.addr %s239, 8
      %s241 = smul.addr %s240, 8
      %s242 = scalar_lea.vmem %s6, %s241
      %p243 = scmp.lt.s32.totalorder %s18, 1
      %s244 = scalar_select %p243, %s18, 1
      %s245 = smul.addr %s244, 8
      %s246 = smul.addr %s245, 8
      %s247 = scalar_lea.vmem %s0, %s246
      %p248 = scmp.lt.s32.totalorder %s18, 1
      %s249 = scalar_select %p248, %s18, 1
      %s250 = smul.addr %s249, 8
      %s251 = smul.addr %s250, 8
      %s252 = scalar_lea.vmem %s6, %s251
      %v254 = vld [vmem:[%s247] sm:$0xff]
      %v255 = vld [vmem:[%s247 + $0x8] sm:$0xff]
      %v256 = vld [vmem:[%s247 + $0x10] sm:$0xff]
      %v257 = vld [vmem:[%s247 + $0x18] sm:$0xff]
      %v258 = vld [vmem:[%s247 + $0x20] sm:$0xff]
      %v259 = vld [vmem:[%s247 + $0x28] sm:$0xff]
      %v260 = vld [vmem:[%s247 + $0x30] sm:$0xff]
      %v261 = vld [vmem:[%s247 + $0x38] sm:$0xff]
      %v262 = vpack.c.bf16 %v256, %v254
      %v263 = vpack.c.bf16 %v257, %v255
      %v264 = vpack.c.bf16 %v260, %v258
      %v265 = vpack.c.bf16 %v261, %v259
      %v266 = vld [vmem:[%s1] sm:$0x3]
      %v267 = vld [vmem:[%s2] sm:$0x3]
      %v268 = vld [vmem:[%s3] sm:$0xf]
      %v269 = vld [vmem:[%s3 + $0x4] sm:$0xf]
      %v270 = vld [vmem:[%s4] sm:$0xf]
      %v271 = vld [vmem:[%s4 + $0x4] sm:$0xf]
      %v272 = vld [vmem:[%s4 + $0x8] sm:$0xf]
      %v273 = vld [vmem:[%s4 + $0xc] sm:$0xf]
      %s274 = sld [smem:[#allocation2]]
      %275 = vxpose.xlu0.c.b16.start [1/8] %v262, 128
      %276 = vxpose.xlu0.c.b16.cont [2/8] %v264, 128
      %277 = vxpose.xlu0.c.b16.cont [3/8] 0, 128
      %278 = vxpose.xlu0.c.b16.cont [4/8] 0, 128
      %279 = vxpose.xlu0.c.b16.cont [5/8] 0, 128
      %280 = vxpose.xlu0.c.b16.cont [6/8] 0, 128
      %281 = vxpose.xlu0.c.b16.cont [7/8] 0, 128
      %282 = vxpose.xlu0.c.b16.end [8/8] 0, 128
      %v283 = vpop.trf.xlu0
      %v284 = vpop.trf.xlu0
      %v285 = vpop.trf.xlu0
      %v286 = vpop.trf.xlu0
      %v287 = vpop.trf.xlu0
      %v288 = vpop.trf.xlu0
      %v289 = vpop.trf.xlu0
      %v290 = vpop.trf.xlu0
      %291 = vxpose.xlu0.c.b16.start [1/8] %v263, 128
      %292 = vxpose.xlu0.c.b16.cont [2/8] %v265, 128
      %293 = vxpose.xlu0.c.b16.cont [3/8] 0, 128
      %294 = vxpose.xlu0.c.b16.cont [4/8] 0, 128
      %295 = vxpose.xlu0.c.b16.cont [5/8] 0, 128
      %296 = vxpose.xlu0.c.b16.cont [6/8] 0, 128
      %297 = vxpose.xlu0.c.b16.cont [7/8] 0, 128
      %298 = vxpose.xlu0.c.b16.end [8/8] 0, 128
      %v299 = vpop.trf.xlu0
      %v300 = vpop.trf.xlu0
      %v301 = vpop.trf.xlu0
      %v302 = vpop.trf.xlu0
      %v303 = vpop.trf.xlu0
      %v304 = vpop.trf.xlu0
      %v305 = vpop.trf.xlu0
      %v306 = vpop.trf.xlu0
      %vm307 = vcmask 261120
      %v309 = vsel %vm307, %v283, 0
      %v312 = vsel %vm307, %v284, 0
      %v315 = vsel %vm307, %v285, 0
      %v318 = vsel %vm307, %v286, 0
      %v321 = vsel %vm307, %v287, 0
      %v324 = vsel %vm307, %v288, 0
      %v327 = vsel %vm307, %v289, 0
      %v330 = vsel %vm307, %v290, 0
      %v333 = vsel %vm307, %v299, 0
      %v336 = vsel %vm307, %v300, 0
      %v339 = vsel %vm307, %v301, 0
      %v342 = vsel %vm307, %v302, 0
      %v345 = vsel %vm307, %v303, 0
      %v348 = vsel %vm307, %v304, 0
      %v351 = vsel %vm307, %v305, 0
      %v354 = vsel %vm307, %v306, 0
      %v357 = vsel %vm307, %v266, 0
      %359 = vmatprep.subr.bf16.mxu0 0
      %360 = vmatpush1.bf16.xpose.msra.mxu0 0
      %361 = vmatprep.subr.bf16.mxu0 0
      %362 = vmatpush1.bf16.xpose.msra.mxu0 0
      %363 = vmatprep.subr.bf16.mxu0 0
      %364 = vmatpush1.bf16.xpose.msra.mxu0 0
      %365 = vmatprep.subr.bf16.mxu0 0
      %366 = vmatpush1.bf16.xpose.msra.mxu0 0
      %367 = vmatprep.subr.bf16.mxu0 0
      %368 = vmatpush1.bf16.xpose.msra.mxu0 0
      %369 = vmatprep.subr.bf16.mxu0 0
      %370 = vmatpush1.bf16.xpose.msra.mxu0 0
      %371 = vmatprep.subr.bf16.mxu0 0
      %372 = vmatpush1.bf16.xpose.msra.mxu0 0
      %373 = vmatprep.subr.bf16.mxu0 0
      %374 = vmatpush1.bf16.xpose.msra.mxu0 %v357
      %375 = vmatprep.subr.bf16.mxu0 0
      %376 = vmatpush2.bf16.xpose.msra.mxu0 0
      %377 = vmatprep.subr.bf16.mxu0 0
      %378 = vmatpush2.bf16.xpose.msra.mxu0 0
      %379 = vmatprep.subr.bf16.mxu0 0
      %380 = vmatpush2.bf16.xpose.msra.mxu0 0
      %381 = vmatprep.subr.bf16.mxu0 0
      %382 = vmatpush2.bf16.xpose.msra.mxu0 0
      %383 = vmatprep.subr.bf16.mxu0 0
      %384 = vmatpush2.bf16.xpose.msra.mxu0 0
      %385 = vmatprep.subr.bf16.mxu0 0
      %386 = vmatpush2.bf16.xpose.msra.mxu0 0
      %387 = vmatprep.subr.bf16.mxu0 0
      %388 = vmatpush2.bf16.xpose.msra.mxu0 0
      %389 = vmatprep.subr.bf16.mxu0 0
      %390 = vmatpush2.bf16.xpose.msra.mxu0 0
      %391 = vmatprep.mubr.bf16.mxu0 0
      %392 = vmatmul.mubr.bf16.gmra.mxu0 %v309
      %v393 = vpop.f32.mrf.mxu0
      %v394 = vadd.f32 0.0, %v393
      %v395 = vpop.f32.mrf.mxu0
      %v396 = vpop.f32.mrf.mxu0
      %v397 = vadd.f32 0.0, %v396
      %v398 = vpop.f32.mrf.mxu0
      %399 = vmatprep.mubr.bf16.mxu0 0
      %400 = vmatmul.mubr.bf16.gmra.mxu0 %v312
      %v401 = vpop.f32.mrf.mxu0
      %v402 = vadd.f32 0.0, %v401
      %v403 = vpop.f32.mrf.mxu0
      %v404 = vpop.f32.mrf.mxu0
      %v405 = vadd.f32 0.0, %v404
      %v406 = vpop.f32.mrf.mxu0
      %407 = vmatprep.mubr.bf16.mxu0 0
      %408 = vmatmul.mubr.bf16.gmra.mxu0 %v315
      %v409 = vpop.f32.mrf.mxu0
      %v410 = vadd.f32 0.0, %v409
      %v411 = vpop.f32.mrf.mxu0
      %v412 = vpop.f32.mrf.mxu0
      %v413 = vadd.f32 0.0, %v412
      %v414 = vpop.f32.mrf.mxu0
      %415 = vmatprep.mubr.bf16.mxu0 0
      %416 = vmatmul.mubr.bf16.gmra.mxu0 %v318
      %v417 = vpop.f32.mrf.mxu0
      %v418 = vadd.f32 0.0, %v417
      %v419 = vpop.f32.mrf.mxu0
      %v420 = vpop.f32.mrf.mxu0
      %v421 = vadd.f32 0.0, %v420
      %v422 = vpop.f32.mrf.mxu0
      %423 = vmatprep.mubr.bf16.mxu0 0
      %424 = vmatmul.mubr.bf16.gmra.mxu0 %v321
      %v425 = vpop.f32.mrf.mxu0
      %v426 = vadd.f32 0.0, %v425
      %v427 = vpop.f32.mrf.mxu0
      %v428 = vpop.f32.mrf.mxu0
      %v429 = vadd.f32 0.0, %v428
      %v430 = vpop.f32.mrf.mxu0
      %431 = vmatprep.mubr.bf16.mxu0 0
      %432 = vmatmul.mubr.bf16.gmra.mxu0 %v324
      %v433 = vpop.f32.mrf.mxu0
      %v434 = vadd.f32 0.0, %v433
      %v435 = vpop.f32.mrf.mxu0
      %v436 = vpop.f32.mrf.mxu0
      %v437 = vadd.f32 0.0, %v436
      %v438 = vpop.f32.mrf.mxu0
      %439 = vmatprep.mubr.bf16.mxu0 0
      %440 = vmatmul.mubr.bf16.gmra.mxu0 %v327
      %v441 = vpop.f32.mrf.mxu0
      %v442 = vadd.f32 0.0, %v441
      %v443 = vpop.f32.mrf.mxu0
      %v444 = vpop.f32.mrf.mxu0
      %v445 = vadd.f32 0.0, %v444
      %v446 = vpop.f32.mrf.mxu0
      %447 = vmatprep.mubr.bf16.mxu0 0
      %448 = vmatmul.mubr.bf16.gmra.mxu0 %v330
      %v449 = vpop.f32.mrf.mxu0
      %v450 = vadd.f32 0.0, %v449
      %v451 = vpop.f32.mrf.mxu0
      %v452 = vpop.f32.mrf.mxu0
      %v453 = vadd.f32 0.0, %v452
      %v454 = vpop.f32.mrf.mxu0
      %455 = vmatprep.mubr.bf16.mxu0 0
      %456 = vmatmul.mubr.bf16.gmra.mxu0 %v333
      %v457 = vpop.f32.mrf.mxu0
      %v458 = vadd.f32 0.0, %v457
      %v459 = vpop.f32.mrf.mxu0
      %v460 = vpop.f32.mrf.mxu0
      %v461 = vadd.f32 0.0, %v460
      %v462 = vpop.f32.mrf.mxu0
      %463 = vmatprep.mubr.bf16.mxu0 0
      %464 = vmatmul.mubr.bf16.gmra.mxu0 %v336
      %v465 = vpop.f32.mrf.mxu0
      %v466 = vadd.f32 0.0, %v465
      %v467 = vpop.f32.mrf.mxu0
      %v468 = vpop.f32.mrf.mxu0
      %v469 = vadd.f32 0.0, %v468
      %v470 = vpop.f32.mrf.mxu0
      %471 = vmatprep.mubr.bf16.mxu0 0
      %472 = vmatmul.mubr.bf16.gmra.mxu0 %v339
      %v473 = vpop.f32.mrf.mxu0
      %v474 = vadd.f32 0.0, %v473
      %v475 = vpop.f32.mrf.mxu0
      %v476 = vpop.f32.mrf.mxu0
      %v477 = vadd.f32 0.0, %v476
      %v478 = vpop.f32.mrf.mxu0
      %479 = vmatprep.mubr.bf16.mxu0 0
      %480 = vmatmul.mubr.bf16.gmra.mxu0 %v342
      %v481 = vpop.f32.mrf.mxu0
      %v482 = vadd.f32 0.0, %v481
      %v483 = vpop.f32.mrf.mxu0
      %v484 = vpop.f32.mrf.mxu0
      %v485 = vadd.f32 0.0, %v484
      %v486 = vpop.f32.mrf.mxu0
      %487 = vmatprep.mubr.bf16.mxu0 0
      %488 = vmatmul.mubr.bf16.gmra.mxu0 %v345
      %v489 = vpop.f32.mrf.mxu0
      %v490 = vadd.f32 0.0, %v489
      %v491 = vpop.f32.mrf.mxu0
      %v492 = vpop.f32.mrf.mxu0
      %v493 = vadd.f32 0.0, %v492
      %v494 = vpop.f32.mrf.mxu0
      %495 = vmatprep.mubr.bf16.mxu0 0
      %496 = vmatmul.mubr.bf16.gmra.mxu0 %v348
      %v497 = vpop.f32.mrf.mxu0
      %v498 = vadd.f32 0.0, %v497
      %v499 = vpop.f32.mrf.mxu0
      %v500 = vpop.f32.mrf.mxu0
      %v501 = vadd.f32 0.0, %v500
      %v502 = vpop.f32.mrf.mxu0
      %503 = vmatprep.mubr.bf16.mxu0 0
      %504 = vmatmul.mubr.bf16.gmra.mxu0 %v351
      %v505 = vpop.f32.mrf.mxu0
      %v506 = vadd.f32 0.0, %v505
      %v507 = vpop.f32.mrf.mxu0
      %v508 = vpop.f32.mrf.mxu0
      %v509 = vadd.f32 0.0, %v508
      %v510 = vpop.f32.mrf.mxu0
      %511 = vmatprep.mubr.bf16.mxu0 0
      %512 = vmatmul.mubr.bf16.gmra.mxu0 %v354
      %v513 = vpop.f32.mrf.mxu0
      %v514 = vadd.f32 0.0, %v513
      %v515 = vpop.f32.mrf.mxu0
      %v516 = vpop.f32.mrf.mxu0
      %v517 = vadd.f32 0.0, %v516
      %v518 = vpop.f32.mrf.mxu0
      %519 = vdwg.mxu0
      %v520 = vpack.c.bf16 %v397, %v394
      %v521 = vpack.c.bf16 %v405, %v402
      %v522 = vpack.c.bf16 %v413, %v410
      %v523 = vpack.c.bf16 %v421, %v418
      %v524 = vpack.c.bf16 %v429, %v426
      %v525 = vpack.c.bf16 %v437, %v434
      %v526 = vpack.c.bf16 %v445, %v442
      %v527 = vpack.c.bf16 %v453, %v450
      %v528 = vpack.c.bf16 %v461, %v458
      %v529 = vpack.c.bf16 %v469, %v466
      %v530 = vpack.c.bf16 %v477, %v474
      %v531 = vpack.c.bf16 %v485, %v482
      %v532 = vpack.c.bf16 %v493, %v490
      %v533 = vpack.c.bf16 %v501, %v498
      %v534 = vpack.c.bf16 %v509, %v506
      %v535 = vpack.c.bf16 %v517, %v514
      %v537 = vsel %vm307, %v267, 0
      %539 = vmatprep.subr.bf16.mxu0 0
      %540 = vmatpush1.bf16.msra.mxu0 0
      %541 = vmatprep.subr.bf16.mxu0 0
      %542 = vmatpush1.bf16.msra.mxu0 0
      %543 = vmatprep.subr.bf16.mxu0 0
      %544 = vmatpush1.bf16.msra.mxu0 0
      %545 = vmatprep.subr.bf16.mxu0 0
      %546 = vmatpush1.bf16.msra.mxu0 0
      %547 = vmatprep.subr.bf16.mxu0 0
      %548 = vmatpush1.bf16.msra.mxu0 0
      %549 = vmatprep.subr.bf16.mxu0 0
      %550 = vmatpush1.bf16.msra.mxu0 0
      %551 = vmatprep.subr.bf16.mxu0 %v265
      %552 = vmatpush1.bf16.msra.mxu0 %v264
      %553 = vmatprep.subr.bf16.mxu0 %v263
      %554 = vmatpush1.bf16.msra.mxu0 %v262
      %555 = vmatprep.subr.bf16.mxu0 0
      %556 = vmatpush2.bf16.msra.mxu0 0
      %557 = vmatprep.subr.bf16.mxu0 0
      %558 = vmatpush2.bf16.msra.mxu0 0
      %559 = vmatprep.subr.bf16.mxu0 0
      %560 = vmatpush2.bf16.msra.mxu0 0
      %561 = vmatprep.subr.bf16.mxu0 0
      %562 = vmatpush2.bf16.msra.mxu0 0
      %563 = vmatprep.subr.bf16.mxu0 0
      %564 = vmatpush2.bf16.msra.mxu0 0
      %565 = vmatprep.subr.bf16.mxu0 0
      %566 = vmatpush2.bf16.msra.mxu0 0
      %567 = vmatprep.subr.bf16.mxu0 0
      %568 = vmatpush2.bf16.msra.mxu0 0
      %569 = vmatprep.subr.bf16.mxu0 0
      %570 = vmatpush2.bf16.msra.mxu0 0
      %571 = vmatprep.mubr.bf16.mxu0 0
      %572 = vmatmul.mubr.bf16.gmra.mxu0 %v537
      %v573 = vpop.f32.mrf.mxu0
      %v574 = vadd.f32 0.0, %v573
      %v575 = vpop.f32.mrf.mxu0
      %v576 = vadd.f32 0.0, %v575
      %v577 = vpop.f32.mrf.mxu0
      %v578 = vpop.f32.mrf.mxu0
      %579 = vdwg.mxu0
      %v582 = vunpack.c.l.b16 %v268
      %v583 = vunpack.c.l.b16 %v269
      %v584 = vpack.c.b16 %v583, %v582
      %v586 = vsel %vm307, %v584, 0
      %588 = vmatprep.subr.bf16.mxu0 0
      %589 = vmatpush1.bf16.msra.mxu0 0
      %590 = vmatprep.subr.bf16.mxu0 0
      %591 = vmatpush1.bf16.msra.mxu0 0
      %592 = vmatprep.subr.bf16.mxu0 0
      %593 = vmatpush1.bf16.msra.mxu0 0
      %594 = vmatprep.subr.bf16.mxu0 0
      %595 = vmatpush1.bf16.msra.mxu0 0
      %596 = vmatprep.subr.bf16.mxu0 0
      %597 = vmatpush1.bf16.msra.mxu0 0
      %598 = vmatprep.subr.bf16.mxu0 0
      %599 = vmatpush1.bf16.msra.mxu0 0
      %600 = vmatprep.subr.bf16.mxu0 %v265
      %601 = vmatpush1.bf16.msra.mxu0 %v264
      %602 = vmatprep.subr.bf16.mxu0 %v263
      %603 = vmatpush1.bf16.msra.mxu0 %v262
      %604 = vmatprep.subr.bf16.mxu0 0
      %605 = vmatpush2.bf16.msra.mxu0 0
      %606 = vmatprep.subr.bf16.mxu0 0
      %607 = vmatpush2.bf16.msra.mxu0 0
      %608 = vmatprep.subr.bf16.mxu0 0
      %609 = vmatpush2.bf16.msra.mxu0 0
      %610 = vmatprep.subr.bf16.mxu0 0
      %611 = vmatpush2.bf16.msra.mxu0 0
      %612 = vmatprep.subr.bf16.mxu0 0
      %613 = vmatpush2.bf16.msra.mxu0 0
      %614 = vmatprep.subr.bf16.mxu0 0
      %615 = vmatpush2.bf16.msra.mxu0 0
      %616 = vmatprep.subr.bf16.mxu0 0
      %617 = vmatpush2.bf16.msra.mxu0 0
      %618 = vmatprep.subr.bf16.mxu0 0
      %619 = vmatpush2.bf16.msra.mxu0 0
      %620 = vmatprep.mubr.bf16.mxu0 0
      %621 = vmatmul.mubr.bf16.gmra.mxu0 %v586
      %v622 = vpop.f32.mrf.mxu0
      %v623 = vadd.f32 0.0, %v622
      %v624 = vpop.f32.mrf.mxu0
      %v625 = vadd.f32 0.0, %v624
      %v626 = vpop.f32.mrf.mxu0
      %v627 = vadd.f32 0.0, %v626
      %v628 = vpop.f32.mrf.mxu0
      %v629 = vadd.f32 0.0, %v628
      %630 = vdwg.mxu0
      %632 = vrot.lane.b32.xlu0 %v574, 64
      %v633 = vpop.permute.xlu0 %632
      %v635 = vmax.f32 %v574, %v633
      %638 = vrot.lane.b32.xlu0 %v623, 64
      %v639 = vpop.permute.xlu0 %638
      %640 = vrot.lane.b32.xlu0 %v627, 64
      %v641 = vpop.permute.xlu0 %640
      %v644 = vmax.f32 %v623, %v639
      %v645 = vmax.f32 %v627, %v641
      %v646 = vmax.f32 %v635, %v576
      %v647 = vmax.f32 %v644, %v625
      %v648 = vmax.f32 %v645, %v629
      %650 = vrot.lane.b32.xlu0 %v576, 64
      %v651 = vpop.permute.xlu0 %650
      %v653 = vmax.f32 %v646, %v651
      %656 = vrot.lane.b32.xlu0 %v625, 64
      %v657 = vpop.permute.xlu0 %656
      %658 = vrot.lane.b32.xlu0 %v629, 64
      %v659 = vpop.permute.xlu0 %658
      %v662 = vmax.f32 %v647, %v657
      %v663 = vmax.f32 %v648, %v659
      %v664 = vpack.c.bf16 %v653, %v653
      %v665 = vpack.c.bf16 %v663, %v662
      %vm666 = vcmask 31744
      %v668 = vsel %vm666, %v520, 0
      %v671 = vsel %vm666, %v521, 0
      %v674 = vsel %vm666, %v522, 0
      %v677 = vsel %vm666, %v523, 0
      %v680 = vsel %vm666, %v524, 0
      %v683 = vsel %vm666, %v525, 0
      %v686 = vsel %vm666, %v526, 0
      %v689 = vsel %vm666, %v527, 0
      %v692 = vsel %vm666, %v528, 0
      %v695 = vsel %vm666, %v529, 0
      %v698 = vsel %vm666, %v530, 0
      %v701 = vsel %vm666, %v531, 0
      %v704 = vsel %vm666, %v532, 0
      %v707 = vsel %vm666, %v533, 0
      %v710 = vsel %vm666, %v534, 0
      %v713 = vsel %vm666, %v535, 0
      %vm715 = vcmask 1041408
      %v717 = vsel %vm715, %v664, 0
      %719 = vmatprep.subr.bf16.mxu0 0
      %720 = vmatpush1.bf16.msra.mxu0 0
      %721 = vmatprep.subr.bf16.mxu0 0
      %722 = vmatpush1.bf16.msra.mxu0 0
      %723 = vmatprep.subr.bf16.mxu0 0
      %724 = vmatpush1.bf16.msra.mxu0 0
      %725 = vmatprep.subr.bf16.mxu0 0
      %726 = vmatpush1.bf16.msra.mxu0 0
      %727 = vmatprep.subr.bf16.mxu0 0
      %728 = vmatpush1.bf16.msra.mxu0 0
      %729 = vmatprep.subr.bf16.mxu0 0
      %730 = vmatpush1.bf16.msra.mxu0 0
      %731 = vmatprep.subr.bf16.mxu0 0
      %732 = vmatpush1.bf16.msra.mxu0 0
      %733 = vmatprep.subr.bf16.mxu0 0
      %734 = vmatpush1.bf16.msra.mxu0 %v717
      %735 = vmatprep.subr.bf16.mxu0 0
      %736 = vmatpush2.bf16.msra.mxu0 0
      %737 = vmatprep.subr.bf16.mxu0 0
      %738 = vmatpush2.bf16.msra.mxu0 0
      %739 = vmatprep.subr.bf16.mxu0 0
      %740 = vmatpush2.bf16.msra.mxu0 0
      %741 = vmatprep.subr.bf16.mxu0 0
      %742 = vmatpush2.bf16.msra.mxu0 0
      %743 = vmatprep.subr.bf16.mxu0 0
      %744 = vmatpush2.bf16.msra.mxu0 0
      %745 = vmatprep.subr.bf16.mxu0 0
      %746 = vmatpush2.bf16.msra.mxu0 0
      %747 = vmatprep.subr.bf16.mxu0 0
      %748 = vmatpush2.bf16.msra.mxu0 0
      %749 = vmatprep.subr.bf16.mxu0 0
      %750 = vmatpush2.bf16.msra.mxu0 0
      %751 = vmatprep.mubr.bf16.mxu0 0
      %752 = vmatmul.mubr.bf16.gmra.mxu0 %v668
      %v753 = vpop.f32.mrf.mxu0
      %v754 = vadd.f32 0.0, %v753
      %v755 = vpop.f32.mrf.mxu0
      %v756 = vpop.f32.mrf.mxu0
      %v757 = vadd.f32 0.0, %v756
      %v758 = vpop.f32.mrf.mxu0
      %759 = vmatprep.mubr.bf16.mxu0 0
      %760 = vmatmul.mubr.bf16.gmra.mxu0 %v671
      %v761 = vpop.f32.mrf.mxu0
      %v762 = vadd.f32 0.0, %v761
      %v763 = vpop.f32.mrf.mxu0
      %v764 = vpop.f32.mrf.mxu0
      %v765 = vadd.f32 0.0, %v764
      %v766 = vpop.f32.mrf.mxu0
      %767 = vmatprep.mubr.bf16.mxu0 0
      %768 = vmatmul.mubr.bf16.gmra.mxu0 %v674
      %v769 = vpop.f32.mrf.mxu0
      %v770 = vadd.f32 0.0, %v769
      %v771 = vpop.f32.mrf.mxu0
      %v772 = vpop.f32.mrf.mxu0
      %v773 = vadd.f32 0.0, %v772
      %v774 = vpop.f32.mrf.mxu0
      %775 = vmatprep.mubr.bf16.mxu0 0
      %776 = vmatmul.mubr.bf16.gmra.mxu0 %v677
      %v777 = vpop.f32.mrf.mxu0
      %v778 = vadd.f32 0.0, %v777
      %v779 = vpop.f32.mrf.mxu0
      %v780 = vpop.f32.mrf.mxu0
      %v781 = vadd.f32 0.0, %v780
      %v782 = vpop.f32.mrf.mxu0
      %783 = vmatprep.mubr.bf16.mxu0 0
      %784 = vmatmul.mubr.bf16.gmra.mxu0 %v680
      %v785 = vpop.f32.mrf.mxu0
      %v786 = vadd.f32 0.0, %v785
      %v787 = vpop.f32.mrf.mxu0
      %v788 = vpop.f32.mrf.mxu0
      %v789 = vadd.f32 0.0, %v788
      %v790 = vpop.f32.mrf.mxu0
      %791 = vmatprep.mubr.bf16.mxu0 0
      %792 = vmatmul.mubr.bf16.gmra.mxu0 %v683
      %v793 = vpop.f32.mrf.mxu0
      %v794 = vadd.f32 0.0, %v793
      %v795 = vpop.f32.mrf.mxu0
      %v796 = vpop.f32.mrf.mxu0
      %v797 = vadd.f32 0.0, %v796
      %v798 = vpop.f32.mrf.mxu0
      %799 = vmatprep.mubr.bf16.mxu0 0
      %800 = vmatmul.mubr.bf16.gmra.mxu0 %v686
      %v801 = vpop.f32.mrf.mxu0
      %v802 = vadd.f32 0.0, %v801
      %v803 = vpop.f32.mrf.mxu0
      %v804 = vpop.f32.mrf.mxu0
      %v805 = vadd.f32 0.0, %v804
      %v806 = vpop.f32.mrf.mxu0
      %807 = vmatprep.mubr.bf16.mxu0 0
      %808 = vmatmul.mubr.bf16.gmra.mxu0 %v689
      %v809 = vpop.f32.mrf.mxu0
      %v810 = vadd.f32 0.0, %v809
      %v811 = vpop.f32.mrf.mxu0
      %v812 = vpop.f32.mrf.mxu0
      %v813 = vadd.f32 0.0, %v812
      %v814 = vpop.f32.mrf.mxu0
      %815 = vmatprep.mubr.bf16.mxu0 0
      %816 = vmatmul.mubr.bf16.gmra.mxu0 %v692
      %v817 = vpop.f32.mrf.mxu0
      %v818 = vadd.f32 0.0, %v817
      %v819 = vpop.f32.mrf.mxu0
      %v820 = vpop.f32.mrf.mxu0
      %v821 = vadd.f32 0.0, %v820
      %v822 = vpop.f32.mrf.mxu0
      %823 = vmatprep.mubr.bf16.mxu0 0
      %824 = vmatmul.mubr.bf16.gmra.mxu0 %v695
      %v825 = vpop.f32.mrf.mxu0
      %v826 = vadd.f32 0.0, %v825
      %v827 = vpop.f32.mrf.mxu0
      %v828 = vpop.f32.mrf.mxu0
      %v829 = vadd.f32 0.0, %v828
      %v830 = vpop.f32.mrf.mxu0
      %831 = vmatprep.mubr.bf16.mxu0 0
      %832 = vmatmul.mubr.bf16.gmra.mxu0 %v698
      %v833 = vpop.f32.mrf.mxu0
      %v834 = vadd.f32 0.0, %v833
      %v835 = vpop.f32.mrf.mxu0
      %v836 = vpop.f32.mrf.mxu0
      %v837 = vadd.f32 0.0, %v836
      %v838 = vpop.f32.mrf.mxu0
      %839 = vmatprep.mubr.bf16.mxu0 0
      %840 = vmatmul.mubr.bf16.gmra.mxu0 %v701
      %v841 = vpop.f32.mrf.mxu0
      %v842 = vadd.f32 0.0, %v841
      %v843 = vpop.f32.mrf.mxu0
      %v844 = vpop.f32.mrf.mxu0
      %v845 = vadd.f32 0.0, %v844
      %v846 = vpop.f32.mrf.mxu0
      %847 = vmatprep.mubr.bf16.mxu0 0
      %848 = vmatmul.mubr.bf16.gmra.mxu0 %v704
      %v849 = vpop.f32.mrf.mxu0
      %v850 = vadd.f32 0.0, %v849
      %v851 = vpop.f32.mrf.mxu0
      %v852 = vpop.f32.mrf.mxu0
      %v853 = vadd.f32 0.0, %v852
      %v854 = vpop.f32.mrf.mxu0
      %855 = vmatprep.mubr.bf16.mxu0 0
      %856 = vmatmul.mubr.bf16.gmra.mxu0 %v707
      %v857 = vpop.f32.mrf.mxu0
      %v858 = vadd.f32 0.0, %v857
      %v859 = vpop.f32.mrf.mxu0
      %v860 = vpop.f32.mrf.mxu0
      %v861 = vadd.f32 0.0, %v860
      %v862 = vpop.f32.mrf.mxu0
      %863 = vmatprep.mubr.bf16.mxu0 0
      %864 = vmatmul.mubr.bf16.gmra.mxu0 %v710
      %v865 = vpop.f32.mrf.mxu0
      %v866 = vadd.f32 0.0, %v865
      %v867 = vpop.f32.mrf.mxu0
      %v868 = vpop.f32.mrf.mxu0
      %v869 = vadd.f32 0.0, %v868
      %v870 = vpop.f32.mrf.mxu0
      %871 = vmatprep.mubr.bf16.mxu0 0
      %872 = vmatmul.mubr.bf16.gmra.mxu0 %v713
      %v873 = vpop.f32.mrf.mxu0
      %v874 = vadd.f32 0.0, %v873
      %v875 = vpop.f32.mrf.mxu0
      %v876 = vpop.f32.mrf.mxu0
      %v877 = vadd.f32 0.0, %v876
      %v878 = vpop.f32.mrf.mxu0
      %879 = vdwg.mxu0
      %vm880 = vcmask 523264
      %v881 = vsel %vm880, %v754, -inf
      %882 = vmax.xlane.f32.xlu0 %v881
      %v883 = vpop.xlane.xlu0 %882
      %v884 = vsel %vm880, %v757, -inf
      %885 = vmax.xlane.f32.xlu0 %v884
      %v886 = vpop.xlane.xlu0 %885
      %v887 = vsel %vm880, %v762, -inf
      %888 = vmax.xlane.f32.xlu0 %v887
      %v889 = vpop.xlane.xlu0 %888
      %v890 = vsel %vm880, %v765, -inf
      %891 = vmax.xlane.f32.xlu0 %v890
      %v892 = vpop.xlane.xlu0 %891
      %v893 = vsel %vm880, %v770, -inf
      %894 = vmax.xlane.f32.xlu0 %v893
      %v895 = vpop.xlane.xlu0 %894
      %v896 = vsel %vm880, %v773, -inf
      %897 = vmax.xlane.f32.xlu0 %v896
      %v898 = vpop.xlane.xlu0 %897
      %v899 = vsel %vm880, %v778, -inf
      %900 = vmax.xlane.f32.xlu0 %v899
      %v901 = vpop.xlane.xlu0 %900
      %v902 = vsel %vm880, %v781, -inf
      %903 = vmax.xlane.f32.xlu0 %v902
      %v904 = vpop.xlane.xlu0 %903
      %v905 = vsel %vm880, %v786, -inf
      %906 = vmax.xlane.f32.xlu0 %v905
      %v907 = vpop.xlane.xlu0 %906
      %v908 = vsel %vm880, %v789, -inf
      %909 = vmax.xlane.f32.xlu0 %v908
      %v910 = vpop.xlane.xlu0 %909
      %v911 = vsel %vm880, %v794, -inf
      %912 = vmax.xlane.f32.xlu0 %v911
      %v913 = vpop.xlane.xlu0 %912
      %v914 = vsel %vm880, %v797, -inf
      %915 = vmax.xlane.f32.xlu0 %v914
      %v916 = vpop.xlane.xlu0 %915
      %v917 = vsel %vm880, %v802, -inf
      %918 = vmax.xlane.f32.xlu0 %v917
      %v919 = vpop.xlane.xlu0 %918
      %v920 = vsel %vm880, %v805, -inf
      %921 = vmax.xlane.f32.xlu0 %v920
      %v922 = vpop.xlane.xlu0 %921
      %v923 = vsel %vm880, %v810, -inf
      %924 = vmax.xlane.f32.xlu0 %v923
      %v925 = vpop.xlane.xlu0 %924
      %v926 = vsel %vm880, %v813, -inf
      %927 = vmax.xlane.f32.xlu0 %v926
      %v928 = vpop.xlane.xlu0 %927
      %v929 = vsel %vm880, %v818, -inf
      %930 = vmax.xlane.f32.xlu0 %v929
      %v931 = vpop.xlane.xlu0 %930
      %v932 = vsel %vm880, %v821, -inf
      %933 = vmax.xlane.f32.xlu0 %v932
      %v934 = vpop.xlane.xlu0 %933
      %v935 = vsel %vm880, %v826, -inf
      %936 = vmax.xlane.f32.xlu0 %v935
      %v937 = vpop.xlane.xlu0 %936
      %v938 = vsel %vm880, %v829, -inf
      %939 = vmax.xlane.f32.xlu0 %v938
      %v940 = vpop.xlane.xlu0 %939
      %v941 = vsel %vm880, %v834, -inf
      %942 = vmax.xlane.f32.xlu0 %v941
      %v943 = vpop.xlane.xlu0 %942
      %v944 = vsel %vm880, %v837, -inf
      %945 = vmax.xlane.f32.xlu0 %v944
      %v946 = vpop.xlane.xlu0 %945
      %v947 = vsel %vm880, %v842, -inf
      %948 = vmax.xlane.f32.xlu0 %v947
      %v949 = vpop.xlane.xlu0 %948
      %v950 = vsel %vm880, %v845, -inf
      %951 = vmax.xlane.f32.xlu0 %v950
      %v952 = vpop.xlane.xlu0 %951
      %v953 = vsel %vm880, %v850, -inf
      %954 = vmax.xlane.f32.xlu0 %v953
      %v955 = vpop.xlane.xlu0 %954
      %v956 = vsel %vm880, %v853, -inf
      %957 = vmax.xlane.f32.xlu0 %v956
      %v958 = vpop.xlane.xlu0 %957
      %v959 = vsel %vm880, %v858, -inf
      %960 = vmax.xlane.f32.xlu0 %v959
      %v961 = vpop.xlane.xlu0 %960
      %v962 = vsel %vm880, %v861, -inf
      %963 = vmax.xlane.f32.xlu0 %v962
      %v964 = vpop.xlane.xlu0 %963
      %v965 = vsel %vm880, %v866, -inf
      %966 = vmax.xlane.f32.xlu0 %v965
      %v967 = vpop.xlane.xlu0 %966
      %v968 = vsel %vm880, %v869, -inf
      %969 = vmax.xlane.f32.xlu0 %v968
      %v970 = vpop.xlane.xlu0 %969
      %v971 = vsel %vm880, %v874, -inf
      %972 = vmax.xlane.f32.xlu0 %v971
      %v973 = vpop.xlane.xlu0 %972
      %v974 = vsel %vm880, %v877, -inf
      %975 = vmax.xlane.f32.xlu0 %v974
      %v976 = vpop.xlane.xlu0 %975
      %v977 = vsub.f32 %v754, %v883
      %v978 = vsub.f32 %v757, %v886
      %v979 = vsub.f32 %v762, %v889
      %v980 = vsub.f32 %v765, %v892
      %v981 = vsub.f32 %v770, %v895
      %v982 = vsub.f32 %v773, %v898
      %v983 = vsub.f32 %v778, %v901
      %v984 = vsub.f32 %v781, %v904
      %v985 = vsub.f32 %v786, %v907
      %v986 = vsub.f32 %v789, %v910
      %v987 = vsub.f32 %v794, %v913
      %v988 = vsub.f32 %v797, %v916
      %v989 = vsub.f32 %v802, %v919
      %v990 = vsub.f32 %v805, %v922
      %v991 = vsub.f32 %v810, %v925
      %v992 = vsub.f32 %v813, %v928
      %v993 = vsub.f32 %v818, %v931
      %v994 = vsub.f32 %v821, %v934
      %v995 = vsub.f32 %v826, %v937
      %v996 = vsub.f32 %v829, %v940
      %v997 = vsub.f32 %v834, %v943
      %v998 = vsub.f32 %v837, %v946
      %v999 = vsub.f32 %v842, %v949
      %v1000 = vsub.f32 %v845, %v952
      %v1001 = vsub.f32 %v850, %v955
      %v1002 = vsub.f32 %v853, %v958
      %v1003 = vsub.f32 %v858, %v961
      %v1004 = vsub.f32 %v861, %v964
      %v1005 = vsub.f32 %v866, %v967
      %v1006 = vsub.f32 %v869, %v970
      %v1007 = vsub.f32 %v874, %v973
      %v1008 = vsub.f32 %v877, %v976
      %v1009 = vmul.f32 %v977, 1.442695
      %v1010 = vpow.pop %v1009
      %v1011 = vmul.f32 %v978, 1.442695
      %v1012 = vpow.pop %v1011
      %v1013 = vmul.f32 %v979, 1.442695
      %v1014 = vpow.pop %v1013
      %v1015 = vmul.f32 %v980, 1.442695
      %v1016 = vpow.pop %v1015
      %v1017 = vmul.f32 %v981, 1.442695
      %v1018 = vpow.pop %v1017
      %v1019 = vmul.f32 %v982, 1.442695
      %v1020 = vpow.pop %v1019
      %v1021 = vmul.f32 %v983, 1.442695
      %v1022 = vpow.pop %v1021
      %v1023 = vmul.f32 %v984, 1.442695
      %v1024 = vpow.pop %v1023
      %v1025 = vmul.f32 %v985, 1.442695
      %v1026 = vpow.pop %v1025
      %v1027 = vmul.f32 %v986, 1.442695
      %v1028 = vpow.pop %v1027
      %v1029 = vmul.f32 %v987, 1.442695
      %v1030 = vpow.pop %v1029
      %v1031 = vmul.f32 %v988, 1.442695
      %v1032 = vpow.pop %v1031
      %v1033 = vmul.f32 %v989, 1.442695
      %v1034 = vpow.pop %v1033
      %v1035 = vmul.f32 %v990, 1.442695
      %v1036 = vpow.pop %v1035
      %v1037 = vmul.f32 %v991, 1.442695
      %v1038 = vpow.pop %v1037
      %v1039 = vmul.f32 %v992, 1.442695
      %v1040 = vpow.pop %v1039
      %v1041 = vmul.f32 %v993, 1.442695
      %v1042 = vpow.pop %v1041
      %v1043 = vmul.f32 %v994, 1.442695
      %v1044 = vpow.pop %v1043
      %v1045 = vmul.f32 %v995, 1.442695
      %v1046 = vpow.pop %v1045
      %v1047 = vmul.f32 %v996, 1.442695
      %v1048 = vpow.pop %v1047
      %v1049 = vmul.f32 %v997, 1.442695
      %v1050 = vpow.pop %v1049
      %v1051 = vmul.f32 %v998, 1.442695
      %v1052 = vpow.pop %v1051
      %v1053 = vmul.f32 %v999, 1.442695
      %v1054 = vpow.pop %v1053
      %v1055 = vmul.f32 %v1000, 1.442695
      %v1056 = vpow.pop %v1055
      %v1057 = vmul.f32 %v1001, 1.442695
      %v1058 = vpow.pop %v1057
      %v1059 = vmul.f32 %v1002, 1.442695
      %v1060 = vpow.pop %v1059
      %v1061 = vmul.f32 %v1003, 1.442695
      %v1062 = vpow.pop %v1061
      %v1063 = vmul.f32 %v1004, 1.442695
      %v1064 = vpow.pop %v1063
      %v1065 = vmul.f32 %v1005, 1.442695
      %v1066 = vpow.pop %v1065
      %v1067 = vmul.f32 %v1006, 1.442695
      %v1068 = vpow.pop %v1067
      %v1069 = vmul.f32 %v1007, 1.442695
      %v1070 = vpow.pop %v1069
      %v1071 = vmul.f32 %v1008, 1.442695
      %v1072 = vpow.pop %v1071
      %v1073 = vsel %vm880, %v1010, 0.0
      %1074 = vadd.xlane.f32.xlu0 %v1073
      %v1075 = vpop.xlane.xlu0 %1074
      %v1076 = vsel %vm880, %v1012, 0.0
      %1077 = vadd.xlane.f32.xlu0 %v1076
      %v1078 = vpop.xlane.xlu0 %1077
      %v1079 = vsel %vm880, %v1014, 0.0
      %1080 = vadd.xlane.f32.xlu0 %v1079
      %v1081 = vpop.xlane.xlu0 %1080
      %v1082 = vsel %vm880, %v1016, 0.0
      %1083 = vadd.xlane.f32.xlu0 %v1082
      %v1084 = vpop.xlane.xlu0 %1083
      %v1085 = vsel %vm880, %v1018, 0.0
      %1086 = vadd.xlane.f32.xlu0 %v1085
      %v1087 = vpop.xlane.xlu0 %1086
      %v1088 = vsel %vm880, %v1020, 0.0
      %1089 = vadd.xlane.f32.xlu0 %v1088
      %v1090 = vpop.xlane.xlu0 %1089
      %v1091 = vsel %vm880, %v1022, 0.0
      %1092 = vadd.xlane.f32.xlu0 %v1091
      %v1093 = vpop.xlane.xlu0 %1092
      %v1094 = vsel %vm880, %v1024, 0.0
      %1095 = vadd.xlane.f32.xlu0 %v1094
      %v1096 = vpop.xlane.xlu0 %1095
      %v1097 = vsel %vm880, %v1026, 0.0
      %1098 = vadd.xlane.f32.xlu0 %v1097
      %v1099 = vpop.xlane.xlu0 %1098
      %v1100 = vsel %vm880, %v1028, 0.0
      %1101 = vadd.xlane.f32.xlu0 %v1100
      %v1102 = vpop.xlane.xlu0 %1101
      %v1103 = vsel %vm880, %v1030, 0.0
      %1104 = vadd.xlane.f32.xlu0 %v1103
      %v1105 = vpop.xlane.xlu0 %1104
      %v1106 = vsel %vm880, %v1032, 0.0
      %1107 = vadd.xlane.f32.xlu0 %v1106
      %v1108 = vpop.xlane.xlu0 %1107
      %v1109 = vsel %vm880, %v1034, 0.0
      %1110 = vadd.xlane.f32.xlu0 %v1109
      %v1111 = vpop.xlane.xlu0 %1110
      %v1112 = vsel %vm880, %v1036, 0.0
      %1113 = vadd.xlane.f32.xlu0 %v1112
      %v1114 = vpop.xlane.xlu0 %1113
      %v1115 = vsel %vm880, %v1038, 0.0
      %1116 = vadd.xlane.f32.xlu0 %v1115
      %v1117 = vpop.xlane.xlu0 %1116
      %v1118 = vsel %vm880, %v1040, 0.0
      %1119 = vadd.xlane.f32.xlu0 %v1118
      %v1120 = vpop.xlane.xlu0 %1119
      %v1121 = vsel %vm880, %v1042, 0.0
      %1122 = vadd.xlane.f32.xlu0 %v1121
      %v1123 = vpop.xlane.xlu0 %1122
      %v1124 = vsel %vm880, %v1044, 0.0
      %1125 = vadd.xlane.f32.xlu0 %v1124
      %v1126 = vpop.xlane.xlu0 %1125
      %v1127 = vsel %vm880, %v1046, 0.0
      %1128 = vadd.xlane.f32.xlu0 %v1127
      %v1129 = vpop.xlane.xlu0 %1128
      %v1130 = vsel %vm880, %v1048, 0.0
      %1131 = vadd.xlane.f32.xlu0 %v1130
      %v1132 = vpop.xlane.xlu0 %1131
      %v1133 = vsel %vm880, %v1050, 0.0
      %1134 = vadd.xlane.f32.xlu0 %v1133
      %v1135 = vpop.xlane.xlu0 %1134
      %v1136 = vsel %vm880, %v1052, 0.0
      %1137 = vadd.xlane.f32.xlu0 %v1136
      %v1138 = vpop.xlane.xlu0 %1137
      %v1139 = vsel %vm880, %v1054, 0.0
      %1140 = vadd.xlane.f32.xlu0 %v1139
      %v1141 = vpop.xlane.xlu0 %1140
      %v1142 = vsel %vm880, %v1056, 0.0
      %1143 = vadd.xlane.f32.xlu0 %v1142
      %v1144 = vpop.xlane.xlu0 %1143
      %v1145 = vsel %vm880, %v1058, 0.0
      %1146 = vadd.xlane.f32.xlu0 %v1145
      %v1147 = vpop.xlane.xlu0 %1146
      %v1148 = vsel %vm880, %v1060, 0.0
      %1149 = vadd.xlane.f32.xlu0 %v1148
      %v1150 = vpop.xlane.xlu0 %1149
      %v1151 = vsel %vm880, %v1062, 0.0
      %1152 = vadd.xlane.f32.xlu0 %v1151
      %v1153 = vpop.xlane.xlu0 %1152
      %v1154 = vsel %vm880, %v1064, 0.0
      %1155 = vadd.xlane.f32.xlu0 %v1154
      %v1156 = vpop.xlane.xlu0 %1155
      %v1157 = vsel %vm880, %v1066, 0.0
      %1158 = vadd.xlane.f32.xlu0 %v1157
      %v1159 = vpop.xlane.xlu0 %1158
      %v1160 = vsel %vm880, %v1068, 0.0
      %1161 = vadd.xlane.f32.xlu0 %v1160
      %v1162 = vpop.xlane.xlu0 %1161
      %v1163 = vsel %vm880, %v1070, 0.0
      %1164 = vadd.xlane.f32.xlu0 %v1163
      %v1165 = vpop.xlane.xlu0 %1164
      %v1166 = vsel %vm880, %v1072, 0.0
      %1167 = vadd.xlane.f32.xlu0 %v1166
      %v1168 = vpop.xlane.xlu0 %1167
      %v1169 = vrcp.pop %v1075
      %v1170 = vrcp.pop %v1078
      %v1171 = vrcp.pop %v1081
      %v1172 = vrcp.pop %v1084
      %v1173 = vrcp.pop %v1087
      %v1174 = vrcp.pop %v1090
      %v1175 = vrcp.pop %v1093
      %v1176 = vrcp.pop %v1096
      %v1177 = vrcp.pop %v1099
      %v1178 = vrcp.pop %v1102
      %v1179 = vrcp.pop %v1105
      %v1180 = vrcp.pop %v1108
      %v1181 = vrcp.pop %v1111
      %v1182 = vrcp.pop %v1114
      %v1183 = vrcp.pop %v1117
      %v1184 = vrcp.pop %v1120
      %v1185 = vrcp.pop %v1123
      %v1186 = vrcp.pop %v1126
      %v1187 = vrcp.pop %v1129
      %v1188 = vrcp.pop %v1132
      %v1189 = vrcp.pop %v1135
      %v1190 = vrcp.pop %v1138
      %v1191 = vrcp.pop %v1141
      %v1192 = vrcp.pop %v1144
      %v1193 = vrcp.pop %v1147
      %v1194 = vrcp.pop %v1150
      %v1195 = vrcp.pop %v1153
      %v1196 = vrcp.pop %v1156
      %v1197 = vrcp.pop %v1159
      %v1198 = vrcp.pop %v1162
      %v1199 = vrcp.pop %v1165
      %v1200 = vrcp.pop %v1168
      %v1201 = vmul.f32 %v1010, %v1169
      %v1202 = vmul.f32 %v1012, %v1170
      %v1203 = vmul.f32 %v1014, %v1171
      %v1204 = vmul.f32 %v1016, %v1172
      %v1205 = vmul.f32 %v1018, %v1173
      %v1206 = vmul.f32 %v1020, %v1174
      %v1207 = vmul.f32 %v1022, %v1175
      %v1208 = vmul.f32 %v1024, %v1176
      %v1209 = vmul.f32 %v1026, %v1177
      %v1210 = vmul.f32 %v1028, %v1178
      %v1211 = vmul.f32 %v1030, %v1179
      %v1212 = vmul.f32 %v1032, %v1180
      %v1213 = vmul.f32 %v1034, %v1181
      %v1214 = vmul.f32 %v1036, %v1182
      %v1215 = vmul.f32 %v1038, %v1183
      %v1216 = vmul.f32 %v1040, %v1184
      %v1217 = vmul.f32 %v1042, %v1185
      %v1218 = vmul.f32 %v1044, %v1186
      %v1219 = vmul.f32 %v1046, %v1187
      %v1220 = vmul.f32 %v1048, %v1188
      %v1221 = vmul.f32 %v1050, %v1189
      %v1222 = vmul.f32 %v1052, %v1190
      %v1223 = vmul.f32 %v1054, %v1191
      %v1224 = vmul.f32 %v1056, %v1192
      %v1225 = vmul.f32 %v1058, %v1193
      %v1226 = vmul.f32 %v1060, %v1194
      %v1227 = vmul.f32 %v1062, %v1195
      %v1228 = vmul.f32 %v1064, %v1196
      %v1229 = vmul.f32 %v1066, %v1197
      %v1230 = vmul.f32 %v1068, %v1198
      %v1231 = vmul.f32 %v1070, %v1199
      %v1232 = vmul.f32 %v1072, %v1200
      %v1233 = vpack.c.bf16 %v1202, %v1201
      %v1234 = vpack.c.bf16 %v1204, %v1203
      %v1235 = vpack.c.bf16 %v1206, %v1205
      %v1236 = vpack.c.bf16 %v1208, %v1207
      %v1237 = vpack.c.bf16 %v1210, %v1209
      %v1238 = vpack.c.bf16 %v1212, %v1211
      %v1239 = vpack.c.bf16 %v1214, %v1213
      %v1240 = vpack.c.bf16 %v1216, %v1215
      %v1241 = vpack.c.bf16 %v1218, %v1217
      %v1242 = vpack.c.bf16 %v1220, %v1219
      %v1243 = vpack.c.bf16 %v1222, %v1221
      %v1244 = vpack.c.bf16 %v1224, %v1223
      %v1245 = vpack.c.bf16 %v1226, %v1225
      %v1246 = vpack.c.bf16 %v1228, %v1227
      %v1247 = vpack.c.bf16 %v1230, %v1229
      %v1248 = vpack.c.bf16 %v1232, %v1231
      %v1250 = vsel %vm880, %v665, 0
      %v1253 = vsel %vm880, %v1233, 0
      %v1256 = vsel %vm880, %v1234, 0
      %v1259 = vsel %vm880, %v1235, 0
      %v1262 = vsel %vm880, %v1236, 0
      %v1265 = vsel %vm880, %v1237, 0
      %v1268 = vsel %vm880, %v1238, 0
      %v1271 = vsel %vm880, %v1239, 0
      %v1274 = vsel %vm880, %v1240, 0
      %v1277 = vsel %vm880, %v1241, 0
      %v1280 = vsel %vm880, %v1242, 0
      %v1283 = vsel %vm880, %v1243, 0
      %v1286 = vsel %vm880, %v1244, 0
      %v1289 = vsel %vm880, %v1245, 0
      %v1292 = vsel %vm880, %v1246, 0
      %v1295 = vsel %vm880, %v1247, 0
      %v1298 = vsel %vm880, %v1248, 0
      %1300 = vmatprep.subr.bf16.mxu0 0
      %1301 = vmatpush1.bf16.xpose.msra.mxu0 %v1274
      %1302 = vmatprep.subr.bf16.mxu0 0
      %1303 = vmatpush1.bf16.xpose.msra.mxu0 %v1271
      %1304 = vmatprep.subr.bf16.mxu0 0
      %1305 = vmatpush1.bf16.xpose.msra.mxu0 %v1268
      %1306 = vmatprep.subr.bf16.mxu0 0
      %1307 = vmatpush1.bf16.xpose.msra.mxu0 %v1265
      %1308 = vmatprep.subr.bf16.mxu0 0
      %1309 = vmatpush1.bf16.xpose.msra.mxu0 %v1262
      %1310 = vmatprep.subr.bf16.mxu0 0
      %1311 = vmatpush1.bf16.xpose.msra.mxu0 %v1259
      %1312 = vmatprep.subr.bf16.mxu0 0
      %1313 = vmatpush1.bf16.xpose.msra.mxu0 %v1256
      %1314 = vmatprep.subr.bf16.mxu0 0
      %1315 = vmatpush1.bf16.xpose.msra.mxu0 %v1253
      %1316 = vmatprep.subr.bf16.mxu0 0
      %1317 = vmatpush2.bf16.xpose.msra.mxu0 %v1298
      %1318 = vmatprep.subr.bf16.mxu0 0
      %1319 = vmatpush2.bf16.xpose.msra.mxu0 %v1295
      %1320 = vmatprep.subr.bf16.mxu0 0
      %1321 = vmatpush2.bf16.xpose.msra.mxu0 %v1292
      %1322 = vmatprep.subr.bf16.mxu0 0
      %1323 = vmatpush2.bf16.xpose.msra.mxu0 %v1289
      %1324 = vmatprep.subr.bf16.mxu0 0
      %1325 = vmatpush2.bf16.xpose.msra.mxu0 %v1286
      %1326 = vmatprep.subr.bf16.mxu0 0
      %1327 = vmatpush2.bf16.xpose.msra.mxu0 %v1283
      %1328 = vmatprep.subr.bf16.mxu0 0
      %1329 = vmatpush2.bf16.xpose.msra.mxu0 %v1280
      %1330 = vmatprep.subr.bf16.mxu0 0
      %1331 = vmatpush2.bf16.xpose.msra.mxu0 %v1277
      %1332 = vmatprep.mubr.bf16.mxu0 0
      %1333 = vmatmul.mubr.bf16.gmra.mxu0 %v1250
      %v1334 = vpop.f32.mrf.mxu0
      %v1335 = vadd.f32 0.0, %v1334
      %v1336 = vpop.f32.mrf.mxu0
      %v1337 = vadd.f32 0.0, %v1336
      %v1338 = vpop.f32.mrf.mxu0
      %v1339 = vadd.f32 0.0, %v1338
      %v1340 = vpop.f32.mrf.mxu0
      %v1341 = vadd.f32 0.0, %v1340
      %1342 = vdwg.mxu0
      %v1343 = vpack.c.bf16 %v1339, %v1335
      %v1344 = vpack.c.bf16 %v1341, %v1337
      %v1349 = vunpack.c.l.b16 %v270
      %v1350 = vunpack.c.l.b16 %v271
      %v1351 = vunpack.c.l.b16 %v272
      %v1352 = vunpack.c.l.b16 %v273
      %v1353 = vpack.c.b16 %v1350, %v1349
      %v1354 = vpack.c.b16 %v1352, %v1351
      %vm1355 = vcmask 130048
      %v1357 = vsel %vm1355, %v1353, 0
      %v1360 = vsel %vm1355, %v1354, 0
      %1362 = vmatprep.subr.bf16.mxu0 0
      %1363 = vmatpush1.bf16.msra.mxu0 0
      %1364 = vmatprep.subr.bf16.mxu0 0
      %1365 = vmatpush1.bf16.msra.mxu0 0
      %1366 = vmatprep.subr.bf16.mxu0 0
      %1367 = vmatpush1.bf16.msra.mxu0 0
      %1368 = vmatprep.subr.bf16.mxu0 0
      %1369 = vmatpush1.bf16.msra.mxu0 0
      %1370 = vmatprep.subr.bf16.mxu0 0
      %1371 = vmatpush1.bf16.msra.mxu0 0
      %1372 = vmatprep.subr.bf16.mxu0 0
      %1373 = vmatpush1.bf16.msra.mxu0 0
      %1374 = vmatprep.subr.bf16.mxu0 0
      %1375 = vmatpush1.bf16.msra.mxu0 0
      %1376 = vmatprep.subr.bf16.mxu0 %v1344
      %1377 = vmatpush1.bf16.msra.mxu0 %v1343
      %1378 = vmatprep.subr.bf16.mxu0 0
      %1379 = vmatpush2.bf16.msra.mxu0 0
      %1380 = vmatprep.subr.bf16.mxu0 0
      %1381 = vmatpush2.bf16.msra.mxu0 0
      %1382 = vmatprep.subr.bf16.mxu0 0
      %1383 = vmatpush2.bf16.msra.mxu0 0
      %1384 = vmatprep.subr.bf16.mxu0 0
      %1385 = vmatpush2.bf16.msra.mxu0 0
      %1386 = vmatprep.subr.bf16.mxu0 0
      %1387 = vmatpush2.bf16.msra.mxu0 0
      %1388 = vmatprep.subr.bf16.mxu0 0
      %1389 = vmatpush2.bf16.msra.mxu0 0
      %1390 = vmatprep.subr.bf16.mxu0 0
      %1391 = vmatpush2.bf16.msra.mxu0 0
      %1392 = vmatprep.subr.bf16.mxu0 0
      %1393 = vmatpush2.bf16.msra.mxu0 0
      %1394 = vmatprep.mubr.bf16.mxu0 0
      %1395 = vmatmul.mubr.bf16.gmra.mxu0 %v1357
      %v1396 = vpop.f32.mrf.mxu0
      %v1397 = vadd.f32 0.0, %v1396
      %v1398 = vpop.f32.mrf.mxu0
      %v1399 = vadd.f32 0.0, %v1398
      %v1400 = vpop.f32.mrf.mxu0
      %v1401 = vadd.f32 0.0, %v1400
      %v1402 = vpop.f32.mrf.mxu0
      %v1403 = vadd.f32 0.0, %v1402
      %1404 = vmatprep.mubr.bf16.mxu0 0
      %1405 = vmatmul.mubr.bf16.gmra.mxu0 %v1360
      %v1406 = vpop.f32.mrf.mxu0
      %v1407 = vadd.f32 0.0, %v1406
      %v1408 = vpop.f32.mrf.mxu0
      %v1409 = vadd.f32 0.0, %v1408
      %v1410 = vpop.f32.mrf.mxu0
      %v1411 = vadd.f32 0.0, %v1410
      %v1412 = vpop.f32.mrf.mxu0
      %v1413 = vadd.f32 0.0, %v1412
      %1414 = vdwg.mxu0
      %v1415 = vstv %s274
      %v1416 = vmul.f32 %v1415, %v1397
      %v1417 = vmul.f32 %v1415, %v1399
      %v1418 = vmul.f32 %v1415, %v1401
      %v1419 = vmul.f32 %v1415, %v1403
      %v1420 = vmul.f32 %v1415, %v1407
      %v1421 = vmul.f32 %v1415, %v1409
      %v1422 = vmul.f32 %v1415, %v1411
      %v1423 = vmul.f32 %v1415, %v1413
      %v1424 = vadd.f32 %v1416, %v254
      %v1425 = vadd.f32 %v1417, %v255
      %v1426 = vadd.f32 %v1418, %v256
      %v1427 = vadd.f32 %v1419, %v257
      %v1428 = vadd.f32 %v1420, %v258
      %v1429 = vadd.f32 %v1421, %v259
      %v1430 = vadd.f32 %v1422, %v260
      %v1431 = vadd.f32 %v1423, %v261
      %1432 = vst [vmem:[%s252] sm:$0xff] %v1424
      %1433 = vst [vmem:[%s252 + $0x8] sm:$0xff] %v1425
      %1434 = vst [vmem:[%s252 + $0x10] sm:$0xff] %v1426
      %1435 = vst [vmem:[%s252 + $0x18] sm:$0xff] %v1427
      %1436 = vst [vmem:[%s252 + $0x20] sm:$0xff] %v1428
      %1437 = vst [vmem:[%s252 + $0x28] sm:$0xff] %v1429
      %1438 = vst [vmem:[%s252 + $0x30] sm:$0xff] %v1430
      %1439 = vst [vmem:[%s252 + $0x38] sm:$0xff] %v1431
      %p1440 = scmp.lt.s32.totalorder %s18, 1
      %s1441 = scalar_select %p1440, %s18, 1
      %s1442 = smul.addr %s1441, 8
      %s1443 = smul.addr %s1442, 8
      %s1444 = scalar_lea.vmem %s6, %s1443
      // Predicated region
      $region45: #{self_attention_forward.3} parent=43 // pred_check
        %p1445 = pneg %p167
      $region46: #{self_attention_forward.3} parent=43 // pred_check_branch
        %1447 = sbr.rel (%p1445) target = $region48
      $region47: #{self_attention_forward.3} parent=43 // pred_region
        _
      $region48: #{self_attention_forward.3} parent=43 // pred_fallthru
        _
    $region44: #{self_attention_forward.3} parent=5 // pred_fallthru
      _
    %p1448 = scmp.le.s32.totalorder 2, %s13
    // Predicated region
    $region49: #{self_attention_forward.3} parent=5 // pred_check
      %p1449 = pneg %p1448
    $region50: #{self_attention_forward.3} parent=5 // pred_check_branch
      %1451 = sbr.rel (%p1449) target = $region52
    $region51: #{self_attention_forward.3} parent=5 // pred_region
      %s1452 = ssub.s32 %s13, 2
      // Predicated region
      $region53: #{self_attention_forward.3} parent=51 // pred_check
        %p1453 = pneg %p173
      $region54: #{self_attention_forward.3} parent=51 // pred_check_branch
        %1455 = sbr.rel (%p1453) target = $region56
      $region55: #{self_attention_forward.3} parent=51 // pred_region
        %p1456 = scmp.lt.s32.totalorder %s19, 1
        %s1457 = scalar_select %p1456, %s19, 1
        %s1458 = smul.addr %s1457, 8
        %s1459 = smul.addr %s1458, 8
        %s1460 = scalar_lea.vmem %s6, %s1459
      $region56: #{self_attention_forward.3} parent=51 // pred_fallthru
        _
    $region52: #{self_attention_forward.3} parent=5 // pred_fallthru
      _
  $region6: #{self_attention_forward.3} parent=0 // loop_footer
    %s17 = sadd.s32 1, %s13
  $region7: #{self_attention_forward.3} parent=0 // loop_footer_branch
    %12 = sbr.rel target = $region3
  $region8: #{self_attention_forward.3} parent=0 // loop_exit
    _

</llo_original>
